<compile_context>
chip_gen: v7x
topology: tpu7x:2x2x1
jax: 0.10.0
libtpu: 0.0.40
codegen_flags: <defaults>
</compile_context>

<pallas_src>
import functools

import jax
import jax.numpy as jnp
import numpy as np
from jax.experimental import pallas as pl
from jax.experimental.pallas import tpu as pltpu


# ----------------------------------------------------------------------------
# Pallas kernel: whole sequence in one invocation.
# ----------------------------------------------------------------------------
def gru_q_kernel(x_ref, wih_ref, whh_ref, bin_ref, bhhn_ref, wq_ref, bq_ref,
                 *rest, deuling: bool, T: int, B: int, H: int):
    if deuling:
        wv_ref, bv_ref, q_ref, hn_ref, gi_ref, h_all_ref = rest
    else:
        q_ref, hn_ref, gi_ref, h_all_ref = rest

    # --- prologue: batched input projection for ALL timesteps (off the serial path) ---
    # x_ref: (T*B, D), wih_ref: (D, 3H), bin_ref: (1, 3H) = [b_ih_r+b_hh_r, b_ih_z+b_hh_z, b_ih_n]
    gi_ref[...] = (jnp.dot(x_ref[...], wih_ref[...],
                           preferred_element_type=jnp.float32) + bin_ref[...])

    whh = whh_ref[...]      # (H, 3H)
    bhh_n = bhhn_ref[...]   # (1, H)  -- must stay inside (multiplied by r)

    # --- serial recurrence, fully unrolled (T is a compile-time constant) ---
    h = jnp.zeros((B, H), jnp.float32)
    for t in range(T):
        gi = gi_ref[t * B:(t + 1) * B, :]                            # (B, 3H)
        gh = jnp.dot(h, whh, preferred_element_type=jnp.float32)     # (B, 3H)
        rz = jax.nn.sigmoid(gi[:, :2 * H] + gh[:, :2 * H])
        r = rz[:, :H]
        z = rz[:, H:]
        n = jnp.tanh(gi[:, 2 * H:] + r * (gh[:, 2 * H:] + bhh_n))
        h = (1.0 - z) * n + z * h
        h_all_ref[t * B:(t + 1) * B, :] = h

    # --- epilogue: batched Q / V heads + dueling, single dense writeback ---
    h_flat = h_all_ref[...]                                          # (T*B, H)
    q = jnp.dot(h_flat, wq_ref[...], preferred_element_type=jnp.float32) + bq_ref[...]
    if deuling:
        v = jnp.dot(h_flat, wv_ref[...], preferred_element_type=jnp.float32) + bv_ref[...]
        q = q + v - jnp.mean(q, axis=-1, keepdims=True)

    q_ref[...] = q.astype(q_ref.dtype)                               # (T*B, A), one store
    hn_ref[...] = h[None].astype(hn_ref.dtype)                       # (1, B, H), final only


# ----------------------------------------------------------------------------
# Wrapper
# ----------------------------------------------------------------------------
def gru_net_forward(x, params, *, deuling=False):
    """x: (T, B, D_in) float32.  Returns (Q: (T,B,A), hidden: (1,B,H))."""
    T, B, D = x.shape
    H = params["whh_t"].shape[0]
    A = params["wq_t"].shape[1]

    # Pre-fold r/z biases (b_ih + b_hh); keep b_ih_n in the folded bias, b_hh_n separate.
    bih, bhh = params["bih"], params["bhh"]
    b_in = jnp.concatenate([bih[:, :2 * H] + bhh[:, :2 * H], bih[:, 2 * H:]], axis=1)  # (1, 3H)
    bhh_n = bhh[:, 2 * H:]                                                             # (1, H)

    x2 = x.reshape(T * B, D)   # lane-clean 2D slab for the batched input projection

    inputs = [x2, params["wih_t"], params["whh_t"], b_in, bhh_n,
              params["wq_t"], params["bq"]]
    in_specs = [
        pl.BlockSpec((T * B, D), lambda i: (0, 0)),       # x (flattened time*batch)
        pl.BlockSpec((D, 3 * H), lambda i: (0, 0)),       # W_ih^T
        pl.BlockSpec((H, 3 * H), lambda i: (0, 0)),       # W_hh^T
        pl.BlockSpec((1, 3 * H), lambda i: (0, 0)),       # folded input bias
        pl.BlockSpec((1, H), lambda i: (0, 0)),           # b_hh (n gate)
        pl.BlockSpec((H, A), lambda i: (0, 0)),           # W_q^T
        pl.BlockSpec((1, A), lambda i: (0, 0)),           # b_q
    ]
    if deuling:
        inputs += [params["wv_t"], params["bv"]]
        in_specs += [
            pl.BlockSpec((H, 1), lambda i: (0, 0)),       # W_v^T
            pl.BlockSpec((1, 1), lambda i: (0, 0)),       # b_v
        ]

    out_specs = [
        pl.BlockSpec((T * B, A), lambda i: (0, 0)),       # Q (flattened; reshaped outside)
        pl.BlockSpec((1, B, H), lambda i: (0, 0, 0)),     # final hidden
    ]

    grid_spec = pltpu.PrefetchScalarGridSpec(
        num_scalar_prefetch=0,
        grid=(1,),                                        # whole recurrence in one step
        in_specs=in_specs,
        out_specs=out_specs,
        scratch_shapes=[
            pltpu.VMEM((T * B, 3 * H), jnp.float32),      # gi for all timesteps
            pltpu.VMEM((T * B, H), jnp.float32),          # h_t for all timesteps
        ],
    )

    kernel = functools.partial(gru_q_kernel, deuling=deuling, T=T, B=B, H=H)

    q_flat, hn = pl.pallas_call(
        kernel,
        grid_spec=grid_spec,
        out_shape=(
            jax.ShapeDtypeStruct((T * B, A), jnp.float32),
            jax.ShapeDtypeStruct((1, B, H), jnp.float32),
        ),
        compiler_params=pltpu.CompilerParams(
            dimension_semantics=("arbitrary",),           # serial recurrence
        ),
    )(*inputs)
    return q_flat.reshape(T, B, A), hn


# ----------------------------------------------------------------------------
# Deterministic parameter init (shapes match nn.GRU / nn.Linear in GRUNet)
# ----------------------------------------------------------------------------
def init_params(key, input_size, hidden_size, n_actions):
    ks = jax.random.split(key, 8)
    k_gru = 1.0 / np.sqrt(hidden_size)
    k_lin = 1.0 / np.sqrt(hidden_size)
    u = lambda k, shape, b: jax.random.uniform(k, shape, jnp.float32, -b, b)
    return {
        # stored pre-transposed so the kernel does x @ W^T directly
        "wih_t": u(ks[0], (input_size, 3 * hidden_size), k_gru),
        "whh_t": u(ks[1], (hidden_size, 3 * hidden_size), k_gru),
        "bih":   u(ks[2], (1, 3 * hidden_size), k_gru),
        "bhh":   u(ks[3], (1, 3 * hidden_size), k_gru),
        "wq_t":  u(ks[4], (hidden_size, n_actions), k_lin),
        "bq":    u(ks[5], (1, n_actions), k_lin),
        "wv_t":  u(ks[6], (hidden_size, 1), k_lin),
        "bv":    u(ks[7], (1, 1), k_lin),
    }


# ----------------------------------------------------------------------------
# Pure-JAX reference (mirrors torch nn.GRU + nn.Linear semantics)
# ----------------------------------------------------------------------------
def ref_forward(x, p, *, deuling=False):
    T, B, D = x.shape
    H = p["whh_t"].shape[0]

    def step(h, x_t):
        gi = x_t @ p["wih_t"] + p["bih"]
        gh = h @ p["whh_t"] + p["bhh"]
        r = jax.nn.sigmoid(gi[:, :H] + gh[:, :H])
        z = jax.nn.sigmoid(gi[:, H:2 * H] + gh[:, H:2 * H])
        n = jnp.tanh(gi[:, 2 * H:] + r * gh[:, 2 * H:])
        h_new = (1.0 - z) * n + z * h
        return h_new, h_new

    h_last, outs = jax.lax.scan(step, jnp.zeros((B, H), jnp.float32), x)
    Q = outs @ p["wq_t"] + p["bq"]
    if deuling:
        V = outs @ p["wv_t"] + p["bv"]
        Q = Q + V - Q.mean(axis=2, keepdims=True)
    return Q, h_last[None]


if __name__ == "__main__":
    # observation_space.shape = (16,) -> input_size = 16 ; action_space.n = 4
    T, B, D_IN, H, A = 8, 2, 16, 32, 4

    key = jax.random.PRNGKey(0)
    k_param, k_obs = jax.random.split(key)
    params = init_params(k_param, D_IN, H, A)
    obs = jax.random.normal(k_obs, (T, B, D_IN), dtype=jnp.float32)

    for deuling in (False, True):
        q, hn = gru_net_forward(obs, params, deuling=deuling)
        q = jax.block_until_ready(q)
        hn = jax.block_until_ready(hn)
        q_ref, hn_ref = ref_forward(obs, params, deuling=deuling)
        np.testing.assert_allclose(np.asarray(q), np.asarray(q_ref), rtol=1e-3, atol=1e-3)
        np.testing.assert_allclose(np.asarray(hn), np.asarray(hn_ref), rtol=1e-3, atol=1e-3)

    print("KERNEL_OK")
</pallas_src>

<mosaic_0001>
module attributes {stable_mosaic.version = 11 : i64} {
  func.func @gru_q_kernel(%arg0: i32, %arg1: memref<16x16xf32, #tpu.memory_space<vmem>>, %arg2: memref<16x96xf32, #tpu.memory_space<vmem>>, %arg3: memref<32x96xf32, #tpu.memory_space<vmem>>, %arg4: memref<1x96xf32, #tpu.memory_space<vmem>>, %arg5: memref<1x32xf32, #tpu.memory_space<vmem>>, %arg6: memref<32x4xf32, #tpu.memory_space<vmem>>, %arg7: memref<1x4xf32, #tpu.memory_space<vmem>>, %arg8: memref<16x4xf32, #tpu.memory_space<vmem>>, %arg9: memref<1x2x32xf32, #tpu.memory_space<vmem>>, %arg10: memref<16x96xf32, #tpu.memory_space<vmem>>, %arg11: memref<16x32xf32, #tpu.memory_space<vmem>>) attributes {dimension_semantics = [#tpu.dimension_semantics<arbitrary>], iteration_bounds = array<i64: 1>, scalar_prefetch = 0 : i64, scratch_operands = 2 : i64, tpu.core_type = #tpu.core_type<tc>, window_params = [{pipeline_mode = #tpu.pipeline_mode<synchronous>, transform_indices = @transform_0, window_bounds = array<i64: 16, 16>}, {pipeline_mode = #tpu.pipeline_mode<synchronous>, transform_indices = @transform_1, window_bounds = array<i64: 16, 96>}, {pipeline_mode = #tpu.pipeline_mode<synchronous>, transform_indices = @transform_2, window_bounds = array<i64: 32, 96>}, {pipeline_mode = #tpu.pipeline_mode<synchronous>, transform_indices = @transform_3, window_bounds = array<i64: 1, 96>}, {pipeline_mode = #tpu.pipeline_mode<synchronous>, transform_indices = @transform_4, window_bounds = array<i64: 1, 32>}, {pipeline_mode = #tpu.pipeline_mode<synchronous>, transform_indices = @transform_5, window_bounds = array<i64: 32, 4>}, {pipeline_mode = #tpu.pipeline_mode<synchronous>, transform_indices = @transform_6, window_bounds = array<i64: 1, 4>}, {pipeline_mode = #tpu.pipeline_mode<synchronous>, transform_indices = @transform_7, window_bounds = array<i64: 16, 4>}, {pipeline_mode = #tpu.pipeline_mode<synchronous>, transform_indices = @transform_8, window_bounds = array<i64: 1, 2, 32>}]} {
    %c0 = arith.constant 0 : index
    %c0_0 = arith.constant 0 : index
    %0 = vector.load %arg1[%c0, %c0_0] : memref<16x16xf32, #tpu.memory_space<vmem>>, vector<16x16xf32>
    %c0_1 = arith.constant 0 : index
    %c0_2 = arith.constant 0 : index
    %1 = vector.load %arg2[%c0_1, %c0_2] : memref<16x96xf32, #tpu.memory_space<vmem>>, vector<16x96xf32>
    %cst = arith.constant dense<0.000000e+00> : vector<16x96xf32>
    %2 = tpu.matmul %0, %1, %cst {dimension_numbers = #tpu.dot_dimension_numbers<[1], [0], [0], [1], [0, 0, 1, 1], [], []>} : vector<16x16xf32>, vector<16x96xf32>, vector<16x96xf32> -> vector<16x96xf32>
    %c0_3 = arith.constant 0 : index
    %c0_4 = arith.constant 0 : index
    %3 = vector.load %arg4[%c0_3, %c0_4] : memref<1x96xf32, #tpu.memory_space<vmem>>, vector<1x96xf32>
    %4 = vector.broadcast %3 : vector<1x96xf32> to vector<16x96xf32>
    %5 = arith.addf %2, %4 : vector<16x96xf32>
    %c0_5 = arith.constant 0 : index
    %c0_6 = arith.constant 0 : index
    %6 = vector.load %arg10[%c0_5, %c0_6] : memref<16x96xf32, #tpu.memory_space<vmem>>, vector<16x96xf32>
    tpu.vector_store %arg10[%c0_5, %c0_6], %5 {strides = array<i32>} : memref<16x96xf32, #tpu.memory_space<vmem>>, vector<16x96xf32>,
    %c0_7 = arith.constant 0 : index
    %c0_8 = arith.constant 0 : index
    %7 = vector.load %arg3[%c0_7, %c0_8] : memref<32x96xf32, #tpu.memory_space<vmem>>, vector<32x96xf32>
    %c0_9 = arith.constant 0 : index
    %c0_10 = arith.constant 0 : index
    %8 = vector.load %arg5[%c0_9, %c0_10] : memref<1x32xf32, #tpu.memory_space<vmem>>, vector<1x32xf32>
    %cst_11 = arith.constant 0.000000e+00 : f32
    %9 = vector.broadcast %cst_11 : f32 to vector<2x32xf32>
    %c0_12 = arith.constant 0 : index
    %c0_13 = arith.constant 0 : index
    %10 = vector.load %arg10[%c0_12, %c0_13] : memref<16x96xf32, #tpu.memory_space<vmem>>, vector<2x96xf32>
    %cst_14 = arith.constant dense<0.000000e+00> : vector<2x96xf32>
    %11 = tpu.matmul %9, %7, %cst_14 {dimension_numbers = #tpu.dot_dimension_numbers<[1], [0], [0], [1], [0, 0, 1, 1], [], []>} : vector<2x32xf32>, vector<32x96xf32>, vector<2x96xf32> -> vector<2x96xf32>
    %12 = vector.extract_strided_slice %10 {offsets = [0, 0], sizes = [2, 64], strides = [1, 1]} : vector<2x96xf32> to vector<2x64xf32>
    %13 = vector.extract_strided_slice %11 {offsets = [0, 0], sizes = [2, 64], strides = [1, 1]} : vector<2x96xf32> to vector<2x64xf32>
    %14 = arith.addf %12, %13 : vector<2x64xf32>
    %15 = arith.negf %14 : vector<2x64xf32>
    %16 = math.exp %15 : vector<2x64xf32>
    %cst_15 = arith.constant 1.000000e+00 : f32
    %17 = vector.broadcast %cst_15 : f32 to vector<2x64xf32>
    %18 = arith.addf %17, %16 : vector<2x64xf32>
    %19 = arith.divf %17, %18 : vector<2x64xf32>
    %20 = vector.extract_strided_slice %19 {offsets = [0, 0], sizes = [2, 32], strides = [1, 1]} : vector<2x64xf32> to vector<2x32xf32>
    %21 = vector.extract_strided_slice %19 {offsets = [0, 32], sizes = [2, 32], strides = [1, 1]} : vector<2x64xf32> to vector<2x32xf32>
    %22 = vector.extract_strided_slice %10 {offsets = [0, 64], sizes = [2, 32], strides = [1, 1]} : vector<2x96xf32> to vector<2x32xf32>
    %23 = vector.extract_strided_slice %11 {offsets = [0, 64], sizes = [2, 32], strides = [1, 1]} : vector<2x96xf32> to vector<2x32xf32>
    %24 = vector.broadcast %8 : vector<1x32xf32> to vector<2x32xf32>
    %25 = arith.addf %23, %24 : vector<2x32xf32>
    %26 = arith.mulf %20, %25 : vector<2x32xf32>
    %27 = arith.addf %22, %26 : vector<2x32xf32>
    %28 = math.tanh %27 : vector<2x32xf32>
    %cst_16 = arith.constant 1.000000e+00 : f32
    %29 = vector.broadcast %cst_16 : f32 to vector<2x32xf32>
    %30 = arith.subf %29, %21 : vector<2x32xf32>
    %31 = arith.mulf %30, %28 : vector<2x32xf32>
    %32 = arith.mulf %21, %9 : vector<2x32xf32>
    %33 = arith.addf %31, %32 : vector<2x32xf32>
    %c0_17 = arith.constant 0 : index
    %c0_18 = arith.constant 0 : index
    %34 = vector.load %arg11[%c0_17, %c0_18] : memref<16x32xf32, #tpu.memory_space<vmem>>, vector<2x32xf32>
    tpu.vector_store %arg11[%c0_17, %c0_18], %33 {strides = array<i32>} : memref<16x32xf32, #tpu.memory_space<vmem>>, vector<2x32xf32>,
    %c2 = arith.constant 2 : index
    %c0_19 = arith.constant 0 : index
    %35 = vector.load %arg10[%c2, %c0_19] : memref<16x96xf32, #tpu.memory_space<vmem>>, vector<2x96xf32>
    %cst_20 = arith.constant dense<0.000000e+00> : vector<2x96xf32>
    %36 = tpu.matmul %33, %7, %cst_20 {dimension_numbers = #tpu.dot_dimension_numbers<[1], [0], [0], [1], [0, 0, 1, 1], [], []>} : vector<2x32xf32>, vector<32x96xf32>, vector<2x96xf32> -> vector<2x96xf32>
    %37 = vector.extract_strided_slice %35 {offsets = [0, 0], sizes = [2, 64], strides = [1, 1]} : vector<2x96xf32> to vector<2x64xf32>
    %38 = vector.extract_strided_slice %36 {offsets = [0, 0], sizes = [2, 64], strides = [1, 1]} : vector<2x96xf32> to vector<2x64xf32>
    %39 = arith.addf %37, %38 : vector<2x64xf32>
    %40 = arith.negf %39 : vector<2x64xf32>
    %41 = math.exp %40 : vector<2x64xf32>
    %cst_21 = arith.constant 1.000000e+00 : f32
    %42 = vector.broadcast %cst_21 : f32 to vector<2x64xf32>
    %43 = arith.addf %42, %41 : vector<2x64xf32>
    %44 = arith.divf %42, %43 : vector<2x64xf32>
    %45 = vector.extract_strided_slice %44 {offsets = [0, 0], sizes = [2, 32], strides = [1, 1]} : vector<2x64xf32> to vector<2x32xf32>
    %46 = vector.extract_strided_slice %44 {offsets = [0, 32], sizes = [2, 32], strides = [1, 1]} : vector<2x64xf32> to vector<2x32xf32>
    %47 = vector.extract_strided_slice %35 {offsets = [0, 64], sizes = [2, 32], strides = [1, 1]} : vector<2x96xf32> to vector<2x32xf32>
    %48 = vector.extract_strided_slice %36 {offsets = [0, 64], sizes = [2, 32], strides = [1, 1]} : vector<2x96xf32> to vector<2x32xf32>
    %49 = vector.broadcast %8 : vector<1x32xf32> to vector<2x32xf32>
    %50 = arith.addf %48, %49 : vector<2x32xf32>
    %51 = arith.mulf %45, %50 : vector<2x32xf32>
    %52 = arith.addf %47, %51 : vector<2x32xf32>
    %53 = math.tanh %52 : vector<2x32xf32>
    %cst_22 = arith.constant 1.000000e+00 : f32
    %54 = vector.broadcast %cst_22 : f32 to vector<2x32xf32>
    %55 = arith.subf %54, %46 : vector<2x32xf32>
    %56 = arith.mulf %55, %53 : vector<2x32xf32>
    %57 = arith.mulf %46, %33 : vector<2x32xf32>
    %58 = arith.addf %56, %57 : vector<2x32xf32>
    %c2_23 = arith.constant 2 : index
    %c0_24 = arith.constant 0 : index
    %59 = vector.load %arg11[%c2_23, %c0_24] : memref<16x32xf32, #tpu.memory_space<vmem>>, vector<2x32xf32>
    tpu.vector_store %arg11[%c2_23, %c0_24], %58 {strides = array<i32>} : memref<16x32xf32, #tpu.memory_space<vmem>>, vector<2x32xf32>,
    %c4 = arith.constant 4 : index
    %c0_25 = arith.constant 0 : index
    %60 = vector.load %arg10[%c4, %c0_25] : memref<16x96xf32, #tpu.memory_space<vmem>>, vector<2x96xf32>
    %cst_26 = arith.constant dense<0.000000e+00> : vector<2x96xf32>
    %61 = tpu.matmul %58, %7, %cst_26 {dimension_numbers = #tpu.dot_dimension_numbers<[1], [0], [0], [1], [0, 0, 1, 1], [], []>} : vector<2x32xf32>, vector<32x96xf32>, vector<2x96xf32> -> vector<2x96xf32>
    %62 = vector.extract_strided_slice %60 {offsets = [0, 0], sizes = [2, 64], strides = [1, 1]} : vector<2x96xf32> to vector<2x64xf32>
    %63 = vector.extract_strided_slice %61 {offsets = [0, 0], sizes = [2, 64], strides = [1, 1]} : vector<2x96xf32> to vector<2x64xf32>
    %64 = arith.addf %62, %63 : vector<2x64xf32>
    %65 = arith.negf %64 : vector<2x64xf32>
    %66 = math.exp %65 : vector<2x64xf32>
    %cst_27 = arith.constant 1.000000e+00 : f32
    %67 = vector.broadcast %cst_27 : f32 to vector<2x64xf32>
    %68 = arith.addf %67, %66 : vector<2x64xf32>
    %69 = arith.divf %67, %68 : vector<2x64xf32>
    %70 = vector.extract_strided_slice %69 {offsets = [0, 0], sizes = [2, 32], strides = [1, 1]} : vector<2x64xf32> to vector<2x32xf32>
    %71 = vector.extract_strided_slice %69 {offsets = [0, 32], sizes = [2, 32], strides = [1, 1]} : vector<2x64xf32> to vector<2x32xf32>
    %72 = vector.extract_strided_slice %60 {offsets = [0, 64], sizes = [2, 32], strides = [1, 1]} : vector<2x96xf32> to vector<2x32xf32>
    %73 = vector.extract_strided_slice %61 {offsets = [0, 64], sizes = [2, 32], strides = [1, 1]} : vector<2x96xf32> to vector<2x32xf32>
    %74 = vector.broadcast %8 : vector<1x32xf32> to vector<2x32xf32>
    %75 = arith.addf %73, %74 : vector<2x32xf32>
    %76 = arith.mulf %70, %75 : vector<2x32xf32>
    %77 = arith.addf %72, %76 : vector<2x32xf32>
    %78 = math.tanh %77 : vector<2x32xf32>
    %cst_28 = arith.constant 1.000000e+00 : f32
    %79 = vector.broadcast %cst_28 : f32 to vector<2x32xf32>
    %80 = arith.subf %79, %71 : vector<2x32xf32>
    %81 = arith.mulf %80, %78 : vector<2x32xf32>
    %82 = arith.mulf %71, %58 : vector<2x32xf32>
    %83 = arith.addf %81, %82 : vector<2x32xf32>
    %c4_29 = arith.constant 4 : index
    %c0_30 = arith.constant 0 : index
    %84 = vector.load %arg11[%c4_29, %c0_30] : memref<16x32xf32, #tpu.memory_space<vmem>>, vector<2x32xf32>
    tpu.vector_store %arg11[%c4_29, %c0_30], %83 {strides = array<i32>} : memref<16x32xf32, #tpu.memory_space<vmem>>, vector<2x32xf32>,
    %c6 = arith.constant 6 : index
    %c0_31 = arith.constant 0 : index
    %85 = vector.load %arg10[%c6, %c0_31] : memref<16x96xf32, #tpu.memory_space<vmem>>, vector<2x96xf32>
    %cst_32 = arith.constant dense<0.000000e+00> : vector<2x96xf32>
    %86 = tpu.matmul %83, %7, %cst_32 {dimension_numbers = #tpu.dot_dimension_numbers<[1], [0], [0], [1], [0, 0, 1, 1], [], []>} : vector<2x32xf32>, vector<32x96xf32>, vector<2x96xf32> -> vector<2x96xf32>
    %87 = vector.extract_strided_slice %85 {offsets = [0, 0], sizes = [2, 64], strides = [1, 1]} : vector<2x96xf32> to vector<2x64xf32>
    %88 = vector.extract_strided_slice %86 {offsets = [0, 0], sizes = [2, 64], strides = [1, 1]} : vector<2x96xf32> to vector<2x64xf32>
    %89 = arith.addf %87, %88 : vector<2x64xf32>
    %90 = arith.negf %89 : vector<2x64xf32>
    %91 = math.exp %90 : vector<2x64xf32>
    %cst_33 = arith.constant 1.000000e+00 : f32
    %92 = vector.broadcast %cst_33 : f32 to vector<2x64xf32>
    %93 = arith.addf %92, %91 : vector<2x64xf32>
    %94 = arith.divf %92, %93 : vector<2x64xf32>
    %95 = vector.extract_strided_slice %94 {offsets = [0, 0], sizes = [2, 32], strides = [1, 1]} : vector<2x64xf32> to vector<2x32xf32>
    %96 = vector.extract_strided_slice %94 {offsets = [0, 32], sizes = [2, 32], strides = [1, 1]} : vector<2x64xf32> to vector<2x32xf32>
    %97 = vector.extract_strided_slice %85 {offsets = [0, 64], sizes = [2, 32], strides = [1, 1]} : vector<2x96xf32> to vector<2x32xf32>
    %98 = vector.extract_strided_slice %86 {offsets = [0, 64], sizes = [2, 32], strides = [1, 1]} : vector<2x96xf32> to vector<2x32xf32>
    %99 = vector.broadcast %8 : vector<1x32xf32> to vector<2x32xf32>
    %100 = arith.addf %98, %99 : vector<2x32xf32>
    %101 = arith.mulf %95, %100 : vector<2x32xf32>
    %102 = arith.addf %97, %101 : vector<2x32xf32>
    %103 = math.tanh %102 : vector<2x32xf32>
    %cst_34 = arith.constant 1.000000e+00 : f32
    %104 = vector.broadcast %cst_34 : f32 to vector<2x32xf32>
    %105 = arith.subf %104, %96 : vector<2x32xf32>
    %106 = arith.mulf %105, %103 : vector<2x32xf32>
    %107 = arith.mulf %96, %83 : vector<2x32xf32>
    %108 = arith.addf %106, %107 : vector<2x32xf32>
    %c6_35 = arith.constant 6 : index
    %c0_36 = arith.constant 0 : index
    %109 = vector.load %arg11[%c6_35, %c0_36] : memref<16x32xf32, #tpu.memory_space<vmem>>, vector<2x32xf32>
    tpu.vector_store %arg11[%c6_35, %c0_36], %108 {strides = array<i32>} : memref<16x32xf32, #tpu.memory_space<vmem>>, vector<2x32xf32>,
    %c8 = arith.constant 8 : index
    %c0_37 = arith.constant 0 : index
    %110 = vector.load %arg10[%c8, %c0_37] : memref<16x96xf32, #tpu.memory_space<vmem>>, vector<2x96xf32>
    %cst_38 = arith.constant dense<0.000000e+00> : vector<2x96xf32>
    %111 = tpu.matmul %108, %7, %cst_38 {dimension_numbers = #tpu.dot_dimension_numbers<[1], [0], [0], [1], [0, 0, 1, 1], [], []>} : vector<2x32xf32>, vector<32x96xf32>, vector<2x96xf32> -> vector<2x96xf32>
    %112 = vector.extract_strided_slice %110 {offsets = [0, 0], sizes = [2, 64], strides = [1, 1]} : vector<2x96xf32> to vector<2x64xf32>
    %113 = vector.extract_strided_slice %111 {offsets = [0, 0], sizes = [2, 64], strides = [1, 1]} : vector<2x96xf32> to vector<2x64xf32>
    %114 = arith.addf %112, %113 : vector<2x64xf32>
    %115 = arith.negf %114 : vector<2x64xf32>
    %116 = math.exp %115 : vector<2x64xf32>
    %cst_39 = arith.constant 1.000000e+00 : f32
    %117 = vector.broadcast %cst_39 : f32 to vector<2x64xf32>
    %118 = arith.addf %117, %116 : vector<2x64xf32>
    %119 = arith.divf %117, %118 : vector<2x64xf32>
    %120 = vector.extract_strided_slice %119 {offsets = [0, 0], sizes = [2, 32], strides = [1, 1]} : vector<2x64xf32> to vector<2x32xf32>
    %121 = vector.extract_strided_slice %119 {offsets = [0, 32], sizes = [2, 32], strides = [1, 1]} : vector<2x64xf32> to vector<2x32xf32>
    %122 = vector.extract_strided_slice %110 {offsets = [0, 64], sizes = [2, 32], strides = [1, 1]} : vector<2x96xf32> to vector<2x32xf32>
    %123 = vector.extract_strided_slice %111 {offsets = [0, 64], sizes = [2, 32], strides = [1, 1]} : vector<2x96xf32> to vector<2x32xf32>
    %124 = vector.broadcast %8 : vector<1x32xf32> to vector<2x32xf32>
    %125 = arith.addf %123, %124 : vector<2x32xf32>
    %126 = arith.mulf %120, %125 : vector<2x32xf32>
    %127 = arith.addf %122, %126 : vector<2x32xf32>
    %128 = math.tanh %127 : vector<2x32xf32>
    %cst_40 = arith.constant 1.000000e+00 : f32
    %129 = vector.broadcast %cst_40 : f32 to vector<2x32xf32>
    %130 = arith.subf %129, %121 : vector<2x32xf32>
    %131 = arith.mulf %130, %128 : vector<2x32xf32>
    %132 = arith.mulf %121, %108 : vector<2x32xf32>
    %133 = arith.addf %131, %132 : vector<2x32xf32>
    %c8_41 = arith.constant 8 : index
    %c0_42 = arith.constant 0 : index
    %134 = vector.load %arg11[%c8_41, %c0_42] : memref<16x32xf32, #tpu.memory_space<vmem>>, vector<2x32xf32>
    tpu.vector_store %arg11[%c8_41, %c0_42], %133 {strides = array<i32>} : memref<16x32xf32, #tpu.memory_space<vmem>>, vector<2x32xf32>,
    %c10 = arith.constant 10 : index
    %c0_43 = arith.constant 0 : index
    %135 = vector.load %arg10[%c10, %c0_43] : memref<16x96xf32, #tpu.memory_space<vmem>>, vector<2x96xf32>
    %cst_44 = arith.constant dense<0.000000e+00> : vector<2x96xf32>
    %136 = tpu.matmul %133, %7, %cst_44 {dimension_numbers = #tpu.dot_dimension_numbers<[1], [0], [0], [1], [0, 0, 1, 1], [], []>} : vector<2x32xf32>, vector<32x96xf32>, vector<2x96xf32> -> vector<2x96xf32>
    %137 = vector.extract_strided_slice %135 {offsets = [0, 0], sizes = [2, 64], strides = [1, 1]} : vector<2x96xf32> to vector<2x64xf32>
    %138 = vector.extract_strided_slice %136 {offsets = [0, 0], sizes = [2, 64], strides = [1, 1]} : vector<2x96xf32> to vector<2x64xf32>
    %139 = arith.addf %137, %138 : vector<2x64xf32>
    %140 = arith.negf %139 : vector<2x64xf32>
    %141 = math.exp %140 : vector<2x64xf32>
    %cst_45 = arith.constant 1.000000e+00 : f32
    %142 = vector.broadcast %cst_45 : f32 to vector<2x64xf32>
    %143 = arith.addf %142, %141 : vector<2x64xf32>
    %144 = arith.divf %142, %143 : vector<2x64xf32>
    %145 = vector.extract_strided_slice %144 {offsets = [0, 0], sizes = [2, 32], strides = [1, 1]} : vector<2x64xf32> to vector<2x32xf32>
    %146 = vector.extract_strided_slice %144 {offsets = [0, 32], sizes = [2, 32], strides = [1, 1]} : vector<2x64xf32> to vector<2x32xf32>
    %147 = vector.extract_strided_slice %135 {offsets = [0, 64], sizes = [2, 32], strides = [1, 1]} : vector<2x96xf32> to vector<2x32xf32>
    %148 = vector.extract_strided_slice %136 {offsets = [0, 64], sizes = [2, 32], strides = [1, 1]} : vector<2x96xf32> to vector<2x32xf32>
    %149 = vector.broadcast %8 : vector<1x32xf32> to vector<2x32xf32>
    %150 = arith.addf %148, %149 : vector<2x32xf32>
    %151 = arith.mulf %145, %150 : vector<2x32xf32>
    %152 = arith.addf %147, %151 : vector<2x32xf32>
    %153 = math.tanh %152 : vector<2x32xf32>
    %cst_46 = arith.constant 1.000000e+00 : f32
    %154 = vector.broadcast %cst_46 : f32 to vector<2x32xf32>
    %155 = arith.subf %154, %146 : vector<2x32xf32>
    %156 = arith.mulf %155, %153 : vector<2x32xf32>
    %157 = arith.mulf %146, %133 : vector<2x32xf32>
    %158 = arith.addf %156, %157 : vector<2x32xf32>
    %c10_47 = arith.constant 10 : index
    %c0_48 = arith.constant 0 : index
    %159 = vector.load %arg11[%c10_47, %c0_48] : memref<16x32xf32, #tpu.memory_space<vmem>>, vector<2x32xf32>
    tpu.vector_store %arg11[%c10_47, %c0_48], %158 {strides = array<i32>} : memref<16x32xf32, #tpu.memory_space<vmem>>, vector<2x32xf32>,
    %c12 = arith.constant 12 : index
    %c0_49 = arith.constant 0 : index
    %160 = vector.load %arg10[%c12, %c0_49] : memref<16x96xf32, #tpu.memory_space<vmem>>, vector<2x96xf32>
    %cst_50 = arith.constant dense<0.000000e+00> : vector<2x96xf32>
    %161 = tpu.matmul %158, %7, %cst_50 {dimension_numbers = #tpu.dot_dimension_numbers<[1], [0], [0], [1], [0, 0, 1, 1], [], []>} : vector<2x32xf32>, vector<32x96xf32>, vector<2x96xf32> -> vector<2x96xf32>
    %162 = vector.extract_strided_slice %160 {offsets = [0, 0], sizes = [2, 64], strides = [1, 1]} : vector<2x96xf32> to vector<2x64xf32>
    %163 = vector.extract_strided_slice %161 {offsets = [0, 0], sizes = [2, 64], strides = [1, 1]} : vector<2x96xf32> to vector<2x64xf32>
    %164 = arith.addf %162, %163 : vector<2x64xf32>
    %165 = arith.negf %164 : vector<2x64xf32>
    %166 = math.exp %165 : vector<2x64xf32>
    %cst_51 = arith.constant 1.000000e+00 : f32
    %167 = vector.broadcast %cst_51 : f32 to vector<2x64xf32>
    %168 = arith.addf %167, %166 : vector<2x64xf32>
    %169 = arith.divf %167, %168 : vector<2x64xf32>
    %170 = vector.extract_strided_slice %169 {offsets = [0, 0], sizes = [2, 32], strides = [1, 1]} : vector<2x64xf32> to vector<2x32xf32>
    %171 = vector.extract_strided_slice %169 {offsets = [0, 32], sizes = [2, 32], strides = [1, 1]} : vector<2x64xf32> to vector<2x32xf32>
    %172 = vector.extract_strided_slice %160 {offsets = [0, 64], sizes = [2, 32], strides = [1, 1]} : vector<2x96xf32> to vector<2x32xf32>
    %173 = vector.extract_strided_slice %161 {offsets = [0, 64], sizes = [2, 32], strides = [1, 1]} : vector<2x96xf32> to vector<2x32xf32>
    %174 = vector.broadcast %8 : vector<1x32xf32> to vector<2x32xf32>
    %175 = arith.addf %173, %174 : vector<2x32xf32>
    %176 = arith.mulf %170, %175 : vector<2x32xf32>
    %177 = arith.addf %172, %176 : vector<2x32xf32>
    %178 = math.tanh %177 : vector<2x32xf32>
    %cst_52 = arith.constant 1.000000e+00 : f32
    %179 = vector.broadcast %cst_52 : f32 to vector<2x32xf32>
    %180 = arith.subf %179, %171 : vector<2x32xf32>
    %181 = arith.mulf %180, %178 : vector<2x32xf32>
    %182 = arith.mulf %171, %158 : vector<2x32xf32>
    %183 = arith.addf %181, %182 : vector<2x32xf32>
    %c12_53 = arith.constant 12 : index
    %c0_54 = arith.constant 0 : index
    %184 = vector.load %arg11[%c12_53, %c0_54] : memref<16x32xf32, #tpu.memory_space<vmem>>, vector<2x32xf32>
    tpu.vector_store %arg11[%c12_53, %c0_54], %183 {strides = array<i32>} : memref<16x32xf32, #tpu.memory_space<vmem>>, vector<2x32xf32>,
    %c14 = arith.constant 14 : index
    %c0_55 = arith.constant 0 : index
    %185 = vector.load %arg10[%c14, %c0_55] : memref<16x96xf32, #tpu.memory_space<vmem>>, vector<2x96xf32>
    %cst_56 = arith.constant dense<0.000000e+00> : vector<2x96xf32>
    %186 = tpu.matmul %183, %7, %cst_56 {dimension_numbers = #tpu.dot_dimension_numbers<[1], [0], [0], [1], [0, 0, 1, 1], [], []>} : vector<2x32xf32>, vector<32x96xf32>, vector<2x96xf32> -> vector<2x96xf32>
    %187 = vector.extract_strided_slice %185 {offsets = [0, 0], sizes = [2, 64], strides = [1, 1]} : vector<2x96xf32> to vector<2x64xf32>
    %188 = vector.extract_strided_slice %186 {offsets = [0, 0], sizes = [2, 64], strides = [1, 1]} : vector<2x96xf32> to vector<2x64xf32>
    %189 = arith.addf %187, %188 : vector<2x64xf32>
    %190 = arith.negf %189 : vector<2x64xf32>
    %191 = math.exp %190 : vector<2x64xf32>
    %cst_57 = arith.constant 1.000000e+00 : f32
    %192 = vector.broadcast %cst_57 : f32 to vector<2x64xf32>
    %193 = arith.addf %192, %191 : vector<2x64xf32>
    %194 = arith.divf %192, %193 : vector<2x64xf32>
    %195 = vector.extract_strided_slice %194 {offsets = [0, 0], sizes = [2, 32], strides = [1, 1]} : vector<2x64xf32> to vector<2x32xf32>
    %196 = vector.extract_strided_slice %194 {offsets = [0, 32], sizes = [2, 32], strides = [1, 1]} : vector<2x64xf32> to vector<2x32xf32>
    %197 = vector.extract_strided_slice %185 {offsets = [0, 64], sizes = [2, 32], strides = [1, 1]} : vector<2x96xf32> to vector<2x32xf32>
    %198 = vector.extract_strided_slice %186 {offsets = [0, 64], sizes = [2, 32], strides = [1, 1]} : vector<2x96xf32> to vector<2x32xf32>
    %199 = vector.broadcast %8 : vector<1x32xf32> to vector<2x32xf32>
    %200 = arith.addf %198, %199 : vector<2x32xf32>
    %201 = arith.mulf %195, %200 : vector<2x32xf32>
    %202 = arith.addf %197, %201 : vector<2x32xf32>
    %203 = math.tanh %202 : vector<2x32xf32>
    %cst_58 = arith.constant 1.000000e+00 : f32
    %204 = vector.broadcast %cst_58 : f32 to vector<2x32xf32>
    %205 = arith.subf %204, %196 : vector<2x32xf32>
    %206 = arith.mulf %205, %203 : vector<2x32xf32>
    %207 = arith.mulf %196, %183 : vector<2x32xf32>
    %208 = arith.addf %206, %207 : vector<2x32xf32>
    %c14_59 = arith.constant 14 : index
    %c0_60 = arith.constant 0 : index
    %209 = vector.load %arg11[%c14_59, %c0_60] : memref<16x32xf32, #tpu.memory_space<vmem>>, vector<2x32xf32>
    tpu.vector_store %arg11[%c14_59, %c0_60], %208 {strides = array<i32>} : memref<16x32xf32, #tpu.memory_space<vmem>>, vector<2x32xf32>,
    %c0_61 = arith.constant 0 : index
    %c0_62 = arith.constant 0 : index
    %210 = vector.load %arg11[%c0_61, %c0_62] : memref<16x32xf32, #tpu.memory_space<vmem>>, vector<16x32xf32>
    %c0_63 = arith.constant 0 : index
    %c0_64 = arith.constant 0 : index
    %211 = vector.load %arg6[%c0_63, %c0_64] : memref<32x4xf32, #tpu.memory_space<vmem>>, vector<32x4xf32>
    %cst_65 = arith.constant dense<0.000000e+00> : vector<16x4xf32>
    %212 = tpu.matmul %210, %211, %cst_65 {dimension_numbers = #tpu.dot_dimension_numbers<[1], [0], [0], [1], [0, 0, 1, 1], [], []>} : vector<16x32xf32>, vector<32x4xf32>, vector<16x4xf32> -> vector<16x4xf32>
    %c0_66 = arith.constant 0 : index
    %c0_67 = arith.constant 0 : index
    %213 = vector.load %arg7[%c0_66, %c0_67] : memref<1x4xf32, #tpu.memory_space<vmem>>, vector<1x4xf32>
    %214 = vector.broadcast %213 : vector<1x4xf32> to vector<16x4xf32>
    %215 = arith.addf %212, %214 : vector<16x4xf32>
    %c0_68 = arith.constant 0 : index
    %c0_69 = arith.constant 0 : index
    %216 = vector.load %arg8[%c0_68, %c0_69] : memref<16x4xf32, #tpu.memory_space<vmem>>, vector<16x4xf32>
    tpu.vector_store %arg8[%c0_68, %c0_69], %215 {strides = array<i32>} : memref<16x4xf32, #tpu.memory_space<vmem>>, vector<16x4xf32>,
    %217 = vector.shape_cast %208 : vector<2x32xf32> to vector<1x2x32xf32>
    %c0_70 = arith.constant 0 : index
    %c0_71 = arith.constant 0 : index
    %c0_72 = arith.constant 0 : index
    %218 = vector.load %arg9[%c0_70, %c0_71, %c0_72] : memref<1x2x32xf32, #tpu.memory_space<vmem>>, vector<1x2x32xf32>
    tpu.vector_store %arg9[%c0_70, %c0_71, %c0_72], %217 {strides = array<i32>} : memref<1x2x32xf32, #tpu.memory_space<vmem>>, vector<1x2x32xf32>,
    return
  }
  func.func @transform_0(%arg0: i32) -> (i32, i32) {
    %c0_i32 = arith.constant 0 : i32
    %c0_i32_0 = arith.constant 0 : i32
    %c0_i32_1 = arith.constant 0 : i32
    return %c0_i32, %c0_i32_0 : i32, i32
  }
  func.func @transform_1(%arg0: i32) -> (i32, i32) {
    %c0_i32 = arith.constant 0 : i32
    %c0_i32_0 = arith.constant 0 : i32
    %c0_i32_1 = arith.constant 0 : i32
    return %c0_i32, %c0_i32_0 : i32, i32
  }
  func.func @transform_2(%arg0: i32) -> (i32, i32) {
    %c0_i32 = arith.constant 0 : i32
    %c0_i32_0 = arith.constant 0 : i32
    %c0_i32_1 = arith.constant 0 : i32
    return %c0_i32, %c0_i32_0 : i32, i32
  }
  func.func @transform_3(%arg0: i32) -> (i32, i32) {
    %c0_i32 = arith.constant 0 : i32
    %c0_i32_0 = arith.constant 0 : i32
    %c0_i32_1 = arith.constant 0 : i32
    return %c0_i32, %c0_i32_0 : i32, i32
  }
  func.func @transform_4(%arg0: i32) -> (i32, i32) {
    %c0_i32 = arith.constant 0 : i32
    %c0_i32_0 = arith.constant 0 : i32
    %c0_i32_1 = arith.constant 0 : i32
    return %c0_i32, %c0_i32_0 : i32, i32
  }
  func.func @transform_5(%arg0: i32) -> (i32, i32) {
    %c0_i32 = arith.constant 0 : i32
    %c0_i32_0 = arith.constant 0 : i32
    %c0_i32_1 = arith.constant 0 : i32
    return %c0_i32, %c0_i32_0 : i32, i32
  }
  func.func @transform_6(%arg0: i32) -> (i32, i32) {
    %c0_i32 = arith.constant 0 : i32
    %c0_i32_0 = arith.constant 0 : i32
    %c0_i32_1 = arith.constant 0 : i32
    return %c0_i32, %c0_i32_0 : i32, i32
  }
  func.func @transform_7(%arg0: i32) -> (i32, i32) {
    %c0_i32 = arith.constant 0 : i32
    %c0_i32_0 = arith.constant 0 : i32
    %c0_i32_1 = arith.constant 0 : i32
    return %c0_i32, %c0_i32_0 : i32, i32
  }
  func.func @transform_8(%arg0: i32) -> (i32, i32, i32) {
    %c0_i32 = arith.constant 0 : i32
    %c0_i32_0 = arith.constant 0 : i32
    %c0_i32_1 = arith.constant 0 : i32
    %c0_i32_2 = arith.constant 0 : i32
    return %c0_i32, %c0_i32_0, %c0_i32_1 : i32, i32, i32
  }
}

</mosaic_0001>

<llo_original>
// kernel: tpu_custom_call.1
$region0: #{tpu_custom_call.1}
  #allocation0 [shape = 'u32[]', space=smem, size = 0x4, offset = 0x4, fixed_abs, tag = 'smem constant byte address 0x4 - core index']
  #allocation1 [shape = 'u32[144,128]{1,0:T(1,128)}', space=vmem, size = 0x12000, scoped, tag = 'internal scratch']
  #allocation2 [shape = 'f32[16,96]{1,0:T(8,128)}', space=vmem, size = 0x2000, scoped, tag = 'scratch operand']
  #allocation3 [shape = 'f32[16,32]{1,0:T(8,128)}', space=vmem, size = 0x2000, scoped, tag = 'scratch operand']
  %s0 = inlined_call_operand.hbm [shape: f32[16,16], index: 0, kind: input, shape index: {}]
  %s1 = inlined_call_operand.hbm [shape: f32[16,96], index: 1, kind: input, shape index: {}]
  %s2 = inlined_call_operand.vmem [shape: f32[32,96], index: 2, kind: input, shape index: {}]
  %s3 = inlined_call_operand.vmem [shape: f32[1,96], index: 3, kind: input, shape index: {}]
  %s4 = inlined_call_operand.vmem [shape: f32[1,32], index: 4, kind: input, shape index: {}]
  %s5 = inlined_call_operand.vmem [shape: f32[32,4], index: 5, kind: input, shape index: {}]
  %s6 = inlined_call_operand.vmem [shape: f32[1,4], index: 6, kind: input, shape index: {}]
  %s7 = inlined_call_operand.vmem [shape: f32[16,4], index: 7, kind: output, shape index: {0}]
  %s8 = inlined_call_operand.hbm [shape: f32[1,2,32], index: 8, kind: output, shape index: {1}]
  %9 = xla_tuple %s7, %s8
  %s10 = sld [smem:[#allocation0]]
  $region54: #{tpu_custom_call.1} parent=0
    _
  %s12 = ssub.s32 1, %s10
  %s13 = scalar_select 0, %s12, %s10
  $region1: #{tpu_custom_call.1} parent=0
    #allocation4 [shape = 'u8[8192]{0}', space=vmem, size = 0x2000, scoped, tag = 'input window, operand 0, single buffered']
    #allocation5 [shape = 's32[1]{0}', space=sflag, size = 0x4, scoped, tag = 'scoped memory for tpu_custom_call.1']
    #allocation6 [shape = 's32[1]{0}', space=sflag, size = 0x4, scoped, tag = 'scoped memory for tpu_custom_call.1']
    #allocation7 [shape = 'u8[8192]{0}', space=vmem, size = 0x2000, scoped, tag = 'input window, operand 1, single buffered']
    #allocation8 [shape = 's32[1]{0}', space=sflag, size = 0x4, scoped, tag = 'scoped memory for tpu_custom_call.1']
    #allocation9 [shape = 'u8[1024]{0}', space=vmem, size = 0x400, scoped, tag = 'output window, operand 1, single buffered']
    %14 = vsyncpa [#allocation5], 0
    %15 = vsyncpa [#allocation8], 0
    %16 = vsyncpa [#allocation6], 0
    // Predicated region
    $region2: #{tpu_custom_call.1} parent=1 // pred_check
      _
    $region3: #{tpu_custom_call.1} parent=1 // pred_check_branch
      %18 = sbr.rel (0) target = $region5
    $region4: #{tpu_custom_call.1} parent=1 // pred_region
      %s20 = ssub.s32 256, 256
      %21 = vsyncadd [#allocation5], %s20
      %s22 = sshll.u32 [#allocation4], 4
      %s23 = int_to_ptr.vmem [resolvable:$true] %s22
      %28 = dma.hbm_to_vmem [thread:$0]  %s0, 256, %s23, [#allocation5], 128, 128, 8
    $region5: #{tpu_custom_call.1} parent=1 // pred_fallthru
      _
    // Predicated region
    $region6: #{tpu_custom_call.1} parent=1 // pred_check
      _
    $region7: #{tpu_custom_call.1} parent=1 // pred_check_branch
      %30 = sbr.rel (0) target = $region9
    $region8: #{tpu_custom_call.1} parent=1 // pred_region
      %s32 = ssub.s32 256, 256
      %33 = vsyncadd [#allocation8], %s32
      %s34 = sshll.u32 [#allocation7], 4
      %s35 = int_to_ptr.vmem [resolvable:$true] %s34
      %40 = dma.hbm_to_vmem [thread:$0]  %s1, 256, %s35, [#allocation8], 128, 128, 8
    $region9: #{tpu_custom_call.1} parent=1 // pred_fallthru
      _
    // Predicated region
    $region10: #{tpu_custom_call.1} parent=1 // pred_check
      _
    $region11: #{tpu_custom_call.1} parent=1 // pred_check_branch
      %42 = sbr.rel (0) target = $region13
    $region12: #{tpu_custom_call.1} parent=1 // pred_region
      _
    $region13: #{tpu_custom_call.1} parent=1 // pred_fallthru
      _
    // Predicated region
    $region14: #{tpu_custom_call.1} parent=1 // pred_check
      _
    $region15: #{tpu_custom_call.1} parent=1 // pred_check_branch
      %44 = sbr.rel (0) target = $region17
    $region16: #{tpu_custom_call.1} parent=1 // pred_region
      _
    $region17: #{tpu_custom_call.1} parent=1 // pred_fallthru
      _
    // Predicated region
    $region18: #{tpu_custom_call.1} parent=1 // pred_check
      _
    $region19: #{tpu_custom_call.1} parent=1 // pred_check_branch
      %46 = sbr.rel (0) target = $region21
    $region20: #{tpu_custom_call.1} parent=1 // pred_region
      _
    $region21: #{tpu_custom_call.1} parent=1 // pred_fallthru
      _
    // Predicated region
    $region22: #{tpu_custom_call.1} parent=1 // pred_check
      _
    $region23: #{tpu_custom_call.1} parent=1 // pred_check_branch
      %48 = sbr.rel (0) target = $region25
    $region24: #{tpu_custom_call.1} parent=1 // pred_region
      _
    $region25: #{tpu_custom_call.1} parent=1 // pred_fallthru
      _
    // Predicated region
    $region26: #{tpu_custom_call.1} parent=1 // pred_check
      _
    $region27: #{tpu_custom_call.1} parent=1 // pred_check_branch
      %50 = sbr.rel (0) target = $region29
    $region28: #{tpu_custom_call.1} parent=1 // pred_region
      _
    $region29: #{tpu_custom_call.1} parent=1 // pred_fallthru
      _
    // Predicated region
    $region30: #{tpu_custom_call.1} parent=1 // pred_check
      _
    $region31: #{tpu_custom_call.1} parent=1 // pred_check_branch
      %52 = sbr.rel (0) target = $region33
    $region32: #{tpu_custom_call.1} parent=1 // pred_region
      %53 = dma.done [#allocation5], 256
    $region33: #{tpu_custom_call.1} parent=1 // pred_fallthru
      _
    // Predicated region
    $region34: #{tpu_custom_call.1} parent=1 // pred_check
      _
    $region35: #{tpu_custom_call.1} parent=1 // pred_check_branch
      %55 = sbr.rel (0) target = $region37
    $region36: #{tpu_custom_call.1} parent=1 // pred_region
      %56 = dma.done [#allocation8], 256
    $region37: #{tpu_custom_call.1} parent=1 // pred_fallthru
      _
    %v57 = vld [vmem:[#allocation4] sm:$0xff]
    %v58 = vld [vmem:[#allocation4 + $0x8] sm:$0xff]
    %v59 = vld [vmem:[#allocation7] sm:$0xff]
    %v60 = vld [vmem:[#allocation7 + $0x8] sm:$0xff]
    %v61 = vld [vmem:[%s3] sm:$0x1]
    %v63 = vlaneseq
    %v64 = vshrl.u32 %v63, 7
    %v65 = vsub.s32 0, %v64
    %v66 = vrot.slane %v61, %v65
    %vm68 = vcmask 130048
    %v70 = vsel %vm68, %v57, 0
    %v73 = vsel %vm68, %v58, 0
    %75 = vmatprep.subr.mxu0 0.0
    %76 = vmatpush1.msra.mxu0 %v59
    %77 = vmatprep.subr.mxu0 0.0
    %78 = vmatpush1.msra.mxu0 %v60
    %79 = vmatprep.subr.mxu0 0.0
    %80 = vmatpush1.msra.mxu0 0.0
    %81 = vmatprep.subr.mxu0 0.0
    %82 = vmatpush1.msra.mxu0 0.0
    %83 = vmatprep.subr.mxu0 0.0
    %84 = vmatpush1.msra.mxu0 0.0
    %85 = vmatprep.subr.mxu0 0.0
    %86 = vmatpush1.msra.mxu0 0.0
    %87 = vmatprep.subr.mxu0 0.0
    %88 = vmatpush1.msra.mxu0 0.0
    %89 = vmatprep.subr.mxu0 0.0
    %90 = vmatpush1.msra.mxu0 0.0
    %91 = vmatprep.subr.mxu0 0.0
    %92 = vmatpush1.msra.mxu0 0.0
    %93 = vmatprep.subr.mxu0 0.0
    %94 = vmatpush1.msra.mxu0 0.0
    %95 = vmatprep.subr.mxu0 0.0
    %96 = vmatpush1.msra.mxu0 0.0
    %97 = vmatprep.subr.mxu0 0.0
    %98 = vmatpush1.msra.mxu0 0.0
    %99 = vmatprep.subr.mxu0 0.0
    %100 = vmatpush1.msra.mxu0 0.0
    %101 = vmatprep.subr.mxu0 0.0
    %102 = vmatpush1.msra.mxu0 0.0
    %103 = vmatprep.subr.mxu0 0.0
    %104 = vmatpush1.msra.mxu0 0.0
    %105 = vmatprep.subr.mxu0 0.0
    %106 = vmatpush1.msra.mxu0 0.0
    %107 = vmatprep.subr.mxu0 0.0
    %108 = vmatpush1.msra.mxu0 0.0
    %109 = vmatprep.subr.mxu0 0.0
    %110 = vmatpush1.msra.mxu0 0.0
    %111 = vmatprep.subr.mxu0 0.0
    %112 = vmatpush1.msra.mxu0 0.0
    %113 = vmatprep.subr.mxu0 0.0
    %114 = vmatpush1.msra.mxu0 0.0
    %115 = vmatprep.subr.mxu0 0.0
    %116 = vmatpush1.msra.mxu0 0.0
    %117 = vmatprep.subr.mxu0 0.0
    %118 = vmatpush1.msra.mxu0 0.0
    %119 = vmatprep.subr.mxu0 0.0
    %120 = vmatpush1.msra.mxu0 0.0
    %121 = vmatprep.subr.mxu0 0.0
    %122 = vmatpush1.msra.mxu0 0.0
    %123 = vmatprep.subr.mxu0 0.0
    %124 = vmatpush1.msra.mxu0 0.0
    %125 = vmatprep.subr.mxu0 0.0
    %126 = vmatpush1.msra.mxu0 0.0
    %127 = vmatprep.subr.mxu0 0.0
    %128 = vmatpush1.msra.mxu0 0.0
    %129 = vmatprep.subr.mxu0 0.0
    %130 = vmatpush1.msra.mxu0 0.0
    %131 = vmatprep.subr.mxu0 0.0
    %132 = vmatpush1.msra.mxu0 0.0
    %133 = vmatprep.subr.mxu0 0.0
    %134 = vmatpush1.msra.mxu0 0.0
    %135 = vmatprep.subr.mxu0 0.0
    %136 = vmatpush1.msra.mxu0 0.0
    %137 = vmatprep.subr.mxu0 0.0
    %138 = vmatpush1.msra.mxu0 0.0
    %139 = vmatprep.mubr.f32.mxu0 0.0
    %140 = vmatmul.mubr.f32.gmra.mrb[0].mxu0 %v70
    %v141 = vpop.f32.mrb[0].mxu0
    %v142 = vadd.f32 %v66, %v141
    %v143 = vpop.f32.mrb[0].mxu0
    %144 = vmatprep.mubr.f32.mxu0 0.0
    %145 = vmatmul.mubr.f32.gmra.mrb[0].mxu0 %v73
    %v146 = vpop.f32.mrb[0].mxu0
    %v147 = vadd.f32 %v66, %v146
    %v148 = vpop.f32.mrb[0].mxu0
    %149 = vdwg.mxu0
    %vm150 = vcmask 785408
    %151 = vst.msk [vmem:[#allocation2] sm:$0xff] %vm150, %v142
    %152 = vst.msk [vmem:[#allocation2 + $0x8] sm:$0xff] %vm150, %v147
    %v153 = vld [vmem:[%s2] sm:$0xff]
    %v154 = vld [vmem:[%s2 + $0x8] sm:$0xff]
    %v155 = vld [vmem:[%s2 + $0x10] sm:$0xff]
    %v156 = vld [vmem:[%s2 + $0x18] sm:$0xff]
    %v157 = vld [vmem:[%s4] sm:$0x1]
    %v158 = vld [vmem:[#allocation2] sm:$0x3]
    %vm159 = vcmask 261120
    %v161 = vsel %vm159, 0.0, 0
    %163 = vmatprep.subr.mxu0 0.0
    %164 = vmatpush1.msra.mxu0 %v153
    %165 = vmatprep.subr.mxu0 0.0
    %166 = vmatpush1.msra.mxu0 %v154
    %167 = vmatprep.subr.mxu0 0.0
    %168 = vmatpush1.msra.mxu0 %v155
    %169 = vmatprep.subr.mxu0 0.0
    %170 = vmatpush1.msra.mxu0 %v156
    %171 = vmatprep.subr.mxu0 0.0
    %172 = vmatpush1.msra.mxu0 0.0
    %173 = vmatprep.subr.mxu0 0.0
    %174 = vmatpush1.msra.mxu0 0.0
    %175 = vmatprep.subr.mxu0 0.0
    %176 = vmatpush1.msra.mxu0 0.0
    %177 = vmatprep.subr.mxu0 0.0
    %178 = vmatpush1.msra.mxu0 0.0
    %179 = vmatprep.subr.mxu0 0.0
    %180 = vmatpush1.msra.mxu0 0.0
    %181 = vmatprep.subr.mxu0 0.0
    %182 = vmatpush1.msra.mxu0 0.0
    %183 = vmatprep.subr.mxu0 0.0
    %184 = vmatpush1.msra.mxu0 0.0
    %185 = vmatprep.subr.mxu0 0.0
    %186 = vmatpush1.msra.mxu0 0.0
    %187 = vmatprep.subr.mxu0 0.0
    %188 = vmatpush1.msra.mxu0 0.0
    %189 = vmatprep.subr.mxu0 0.0
    %190 = vmatpush1.msra.mxu0 0.0
    %191 = vmatprep.subr.mxu0 0.0
    %192 = vmatpush1.msra.mxu0 0.0
    %193 = vmatprep.subr.mxu0 0.0
    %194 = vmatpush1.msra.mxu0 0.0
    %195 = vmatprep.subr.mxu0 0.0
    %196 = vmatpush1.msra.mxu0 0.0
    %197 = vmatprep.subr.mxu0 0.0
    %198 = vmatpush1.msra.mxu0 0.0
    %199 = vmatprep.subr.mxu0 0.0
    %200 = vmatpush1.msra.mxu0 0.0
    %201 = vmatprep.subr.mxu0 0.0
    %202 = vmatpush1.msra.mxu0 0.0
    %203 = vmatprep.subr.mxu0 0.0
    %204 = vmatpush1.msra.mxu0 0.0
    %205 = vmatprep.subr.mxu0 0.0
    %206 = vmatpush1.msra.mxu0 0.0
    %207 = vmatprep.subr.mxu0 0.0
    %208 = vmatpush1.msra.mxu0 0.0
    %209 = vmatprep.subr.mxu0 0.0
    %210 = vmatpush1.msra.mxu0 0.0
    %211 = vmatprep.subr.mxu0 0.0
    %212 = vmatpush1.msra.mxu0 0.0
    %213 = vmatprep.subr.mxu0 0.0
    %214 = vmatpush1.msra.mxu0 0.0
    %215 = vmatprep.subr.mxu0 0.0
    %216 = vmatpush1.msra.mxu0 0.0
    %217 = vmatprep.subr.mxu0 0.0
    %218 = vmatpush1.msra.mxu0 0.0
    %219 = vmatprep.subr.mxu0 0.0
    %220 = vmatpush1.msra.mxu0 0.0
    %221 = vmatprep.subr.mxu0 0.0
    %222 = vmatpush1.msra.mxu0 0.0
    %223 = vmatprep.subr.mxu0 0.0
    %224 = vmatpush1.msra.mxu0 0.0
    %225 = vmatprep.subr.mxu0 0.0
    %226 = vmatpush1.msra.mxu0 0.0
    %227 = vmatprep.mubr.f32.mxu0 0.0
    %228 = vmatmul.mubr.f32.gmra.mrb[0].mxu0 %v161
    %v229 = vpop.f32.mrb[0].mxu0
    %v230 = vadd.f32 0.0, %v229
    %v231 = vpop.f32.mrb[0].mxu0
    %232 = vdwg.mxu0
    %v233 = vadd.f32 %v158, %v230
    %v234 = vxor.u32 %v233, 2147483648
    %v235 = vmul.f32 %v234, 1.442695
    %v236 = vpow.pop %v235
    %v237 = vadd.f32 %v236, 1.0
    %v238 = vrcp.pop %v237
    %v239 = vmul.f32 1.0, %v238
    %v241 = vlaneseq
    %v242 = vshrl.u32 %v241, 7
    %v243 = vsub.s32 0, %v242
    %v244 = vrot.slane %v157, %v243
    %245 = vrot.lane.b32.xlu0 %v244, 64
    %v246 = vpop.permute.xlu0 %245
    %v248 = vadd.f32 %v230, %v246
    %250 = vrot.lane.b32.xlu0 %v248, 64
    %v251 = vpop.permute.xlu0 %250
    %v253 = vmul.f32 %v239, %v251
    %255 = vrot.lane.b32.xlu0 %v253, 64
    %v256 = vpop.permute.xlu0 %255
    %v258 = vadd.f32 %v158, %v256
    %v259 = vtanh.pop %v258
    %v260 = vsub.f32 1.0, %v239
    %262 = vrot.lane.b32.xlu0 %v259, 96
    %v263 = vpop.permute.xlu0 %262
    %v265 = vmul.f32 %v260, %v263
    %v266 = vmul.f32 %v239, 0.0
    %v267 = vadd.f32 %v265, %v266
    %269 = vrot.lane.b32.xlu0 %v267, 96
    %v270 = vpop.permute.xlu0 %269
    %vm272 = vcmask 254976
    %273 = vst.msk [vmem:[#allocation3] sm:$0x3] %vm272, %v270
    %v274 = vld [vmem:[#allocation2 + $0x2] sm:$0x3]
    %v275 = vsel %vm159, %v270, 0
    %277 = vmatprep.subr.mxu0 0.0
    %278 = vmatpush1.msra.mxu0 %v153
    %279 = vmatprep.subr.mxu0 0.0
    %280 = vmatpush1.msra.mxu0 %v154
    %281 = vmatprep.subr.mxu0 0.0
    %282 = vmatpush1.msra.mxu0 %v155
    %283 = vmatprep.subr.mxu0 0.0
    %284 = vmatpush1.msra.mxu0 %v156
    %285 = vmatprep.subr.mxu0 0.0
    %286 = vmatpush1.msra.mxu0 0.0
    %287 = vmatprep.subr.mxu0 0.0
    %288 = vmatpush1.msra.mxu0 0.0
    %289 = vmatprep.subr.mxu0 0.0
    %290 = vmatpush1.msra.mxu0 0.0
    %291 = vmatprep.subr.mxu0 0.0
    %292 = vmatpush1.msra.mxu0 0.0
    %293 = vmatprep.subr.mxu0 0.0
    %294 = vmatpush1.msra.mxu0 0.0
    %295 = vmatprep.subr.mxu0 0.0
    %296 = vmatpush1.msra.mxu0 0.0
    %297 = vmatprep.subr.mxu0 0.0
    %298 = vmatpush1.msra.mxu0 0.0
    %299 = vmatprep.subr.mxu0 0.0
    %300 = vmatpush1.msra.mxu0 0.0
    %301 = vmatprep.subr.mxu0 0.0
    %302 = vmatpush1.msra.mxu0 0.0
    %303 = vmatprep.subr.mxu0 0.0
    %304 = vmatpush1.msra.mxu0 0.0
    %305 = vmatprep.subr.mxu0 0.0
    %306 = vmatpush1.msra.mxu0 0.0
    %307 = vmatprep.subr.mxu0 0.0
    %308 = vmatpush1.msra.mxu0 0.0
    %309 = vmatprep.subr.mxu0 0.0
    %310 = vmatpush1.msra.mxu0 0.0
    %311 = vmatprep.subr.mxu0 0.0
    %312 = vmatpush1.msra.mxu0 0.0
    %313 = vmatprep.subr.mxu0 0.0
    %314 = vmatpush1.msra.mxu0 0.0
    %315 = vmatprep.subr.mxu0 0.0
    %316 = vmatpush1.msra.mxu0 0.0
    %317 = vmatprep.subr.mxu0 0.0
    %318 = vmatpush1.msra.mxu0 0.0
    %319 = vmatprep.subr.mxu0 0.0
    %320 = vmatpush1.msra.mxu0 0.0
    %321 = vmatprep.subr.mxu0 0.0
    %322 = vmatpush1.msra.mxu0 0.0
    %323 = vmatprep.subr.mxu0 0.0
    %324 = vmatpush1.msra.mxu0 0.0
    %325 = vmatprep.subr.mxu0 0.0
    %326 = vmatpush1.msra.mxu0 0.0
    %327 = vmatprep.subr.mxu0 0.0
    %328 = vmatpush1.msra.mxu0 0.0
    %329 = vmatprep.subr.mxu0 0.0
    %330 = vmatpush1.msra.mxu0 0.0
    %331 = vmatprep.subr.mxu0 0.0
    %332 = vmatpush1.msra.mxu0 0.0
    %333 = vmatprep.subr.mxu0 0.0
    %334 = vmatpush1.msra.mxu0 0.0
    %335 = vmatprep.subr.mxu0 0.0
    %336 = vmatpush1.msra.mxu0 0.0
    %337 = vmatprep.subr.mxu0 0.0
    %338 = vmatpush1.msra.mxu0 0.0
    %339 = vmatprep.subr.mxu0 0.0
    %340 = vmatpush1.msra.mxu0 0.0
    %341 = vmatprep.mubr.f32.mxu0 0.0
    %342 = vmatmul.mubr.f32.gmra.mrb[0].mxu0 %v275
    %v343 = vpop.f32.mrb[0].mxu0
    %v344 = vadd.f32 0.0, %v343
    %v345 = vpop.f32.mrb[0].mxu0
    %346 = vdwg.mxu0
    %v347 = vadd.f32 %v274, %v344
    %v348 = vxor.u32 %v347, 2147483648
    %v349 = vmul.f32 %v348, 1.442695
    %v350 = vpow.pop %v349
    %v351 = vadd.f32 %v350, 1.0
    %v352 = vrcp.pop %v351
    %v353 = vmul.f32 1.0, %v352
    %v354 = vadd.f32 %v344, %v246
    %356 = vrot.lane.b32.xlu0 %v354, 64
    %v357 = vpop.permute.xlu0 %356
    %v359 = vmul.f32 %v353, %v357
    %361 = vrot.lane.b32.xlu0 %v359, 64
    %v362 = vpop.permute.xlu0 %361
    %v364 = vadd.f32 %v274, %v362
    %v365 = vtanh.pop %v364
    %v366 = vsub.f32 1.0, %v353
    %368 = vrot.lane.b32.xlu0 %v365, 96
    %v369 = vpop.permute.xlu0 %368
    %v371 = vmul.f32 %v366, %v369
    %v372 = vmul.f32 %v353, %v267
    %v373 = vadd.f32 %v371, %v372
    %375 = vrot.lane.b32.xlu0 %v373, 96
    %v376 = vpop.permute.xlu0 %375
    %378 = vst.msk [vmem:[#allocation3 + $0x2] sm:$0x3] %vm272, %v376
    %v379 = vld [vmem:[#allocation2 + $0x4] sm:$0x3]
    %v380 = vsel %vm159, %v376, 0
    %382 = vmatprep.subr.mxu0 0.0
    %383 = vmatpush1.msra.mxu0 %v153
    %384 = vmatprep.subr.mxu0 0.0
    %385 = vmatpush1.msra.mxu0 %v154
    %386 = vmatprep.subr.mxu0 0.0
    %387 = vmatpush1.msra.mxu0 %v155
    %388 = vmatprep.subr.mxu0 0.0
    %389 = vmatpush1.msra.mxu0 %v156
    %390 = vmatprep.subr.mxu0 0.0
    %391 = vmatpush1.msra.mxu0 0.0
    %392 = vmatprep.subr.mxu0 0.0
    %393 = vmatpush1.msra.mxu0 0.0
    %394 = vmatprep.subr.mxu0 0.0
    %395 = vmatpush1.msra.mxu0 0.0
    %396 = vmatprep.subr.mxu0 0.0
    %397 = vmatpush1.msra.mxu0 0.0
    %398 = vmatprep.subr.mxu0 0.0
    %399 = vmatpush1.msra.mxu0 0.0
    %400 = vmatprep.subr.mxu0 0.0
    %401 = vmatpush1.msra.mxu0 0.0
    %402 = vmatprep.subr.mxu0 0.0
    %403 = vmatpush1.msra.mxu0 0.0
    %404 = vmatprep.subr.mxu0 0.0
    %405 = vmatpush1.msra.mxu0 0.0
    %406 = vmatprep.subr.mxu0 0.0
    %407 = vmatpush1.msra.mxu0 0.0
    %408 = vmatprep.subr.mxu0 0.0
    %409 = vmatpush1.msra.mxu0 0.0
    %410 = vmatprep.subr.mxu0 0.0
    %411 = vmatpush1.msra.mxu0 0.0
    %412 = vmatprep.subr.mxu0 0.0
    %413 = vmatpush1.msra.mxu0 0.0
    %414 = vmatprep.subr.mxu0 0.0
    %415 = vmatpush1.msra.mxu0 0.0
    %416 = vmatprep.subr.mxu0 0.0
    %417 = vmatpush1.msra.mxu0 0.0
    %418 = vmatprep.subr.mxu0 0.0
    %419 = vmatpush1.msra.mxu0 0.0
    %420 = vmatprep.subr.mxu0 0.0
    %421 = vmatpush1.msra.mxu0 0.0
    %422 = vmatprep.subr.mxu0 0.0
    %423 = vmatpush1.msra.mxu0 0.0
    %424 = vmatprep.subr.mxu0 0.0
    %425 = vmatpush1.msra.mxu0 0.0
    %426 = vmatprep.subr.mxu0 0.0
    %427 = vmatpush1.msra.mxu0 0.0
    %428 = vmatprep.subr.mxu0 0.0
    %429 = vmatpush1.msra.mxu0 0.0
    %430 = vmatprep.subr.mxu0 0.0
    %431 = vmatpush1.msra.mxu0 0.0
    %432 = vmatprep.subr.mxu0 0.0
    %433 = vmatpush1.msra.mxu0 0.0
    %434 = vmatprep.subr.mxu0 0.0
    %435 = vmatpush1.msra.mxu0 0.0
    %436 = vmatprep.subr.mxu0 0.0
    %437 = vmatpush1.msra.mxu0 0.0
    %438 = vmatprep.subr.mxu0 0.0
    %439 = vmatpush1.msra.mxu0 0.0
    %440 = vmatprep.subr.mxu0 0.0
    %441 = vmatpush1.msra.mxu0 0.0
    %442 = vmatprep.subr.mxu0 0.0
    %443 = vmatpush1.msra.mxu0 0.0
    %444 = vmatprep.subr.mxu0 0.0
    %445 = vmatpush1.msra.mxu0 0.0
    %446 = vmatprep.mubr.f32.mxu0 0.0
    %447 = vmatmul.mubr.f32.gmra.mrb[0].mxu0 %v380
    %v448 = vpop.f32.mrb[0].mxu0
    %v449 = vadd.f32 0.0, %v448
    %v450 = vpop.f32.mrb[0].mxu0
    %451 = vdwg.mxu0
    %v452 = vadd.f32 %v379, %v449
    %v453 = vxor.u32 %v452, 2147483648
    %v454 = vmul.f32 %v453, 1.442695
    %v455 = vpow.pop %v454
    %v456 = vadd.f32 %v455, 1.0
    %v457 = vrcp.pop %v456
    %v458 = vmul.f32 1.0, %v457
    %v459 = vadd.f32 %v449, %v246
    %461 = vrot.lane.b32.xlu0 %v459, 64
    %v462 = vpop.permute.xlu0 %461
    %v464 = vmul.f32 %v458, %v462
    %466 = vrot.lane.b32.xlu0 %v464, 64
    %v467 = vpop.permute.xlu0 %466
    %v469 = vadd.f32 %v379, %v467
    %v470 = vtanh.pop %v469
    %v471 = vsub.f32 1.0, %v458
    %473 = vrot.lane.b32.xlu0 %v470, 96
    %v474 = vpop.permute.xlu0 %473
    %v476 = vmul.f32 %v471, %v474
    %v477 = vmul.f32 %v458, %v373
    %v478 = vadd.f32 %v476, %v477
    %480 = vrot.lane.b32.xlu0 %v478, 96
    %v481 = vpop.permute.xlu0 %480
    %483 = vst.msk [vmem:[#allocation3 + $0x4] sm:$0x3] %vm272, %v481
    %v484 = vld [vmem:[#allocation2 + $0x6] sm:$0x3]
    %v485 = vsel %vm159, %v481, 0
    %487 = vmatprep.subr.mxu0 0.0
    %488 = vmatpush1.msra.mxu0 %v153
    %489 = vmatprep.subr.mxu0 0.0
    %490 = vmatpush1.msra.mxu0 %v154
    %491 = vmatprep.subr.mxu0 0.0
    %492 = vmatpush1.msra.mxu0 %v155
    %493 = vmatprep.subr.mxu0 0.0
    %494 = vmatpush1.msra.mxu0 %v156
    %495 = vmatprep.subr.mxu0 0.0
    %496 = vmatpush1.msra.mxu0 0.0
    %497 = vmatprep.subr.mxu0 0.0
    %498 = vmatpush1.msra.mxu0 0.0
    %499 = vmatprep.subr.mxu0 0.0
    %500 = vmatpush1.msra.mxu0 0.0
    %501 = vmatprep.subr.mxu0 0.0
    %502 = vmatpush1.msra.mxu0 0.0
    %503 = vmatprep.subr.mxu0 0.0
    %504 = vmatpush1.msra.mxu0 0.0
    %505 = vmatprep.subr.mxu0 0.0
    %506 = vmatpush1.msra.mxu0 0.0
    %507 = vmatprep.subr.mxu0 0.0
    %508 = vmatpush1.msra.mxu0 0.0
    %509 = vmatprep.subr.mxu0 0.0
    %510 = vmatpush1.msra.mxu0 0.0
    %511 = vmatprep.subr.mxu0 0.0
    %512 = vmatpush1.msra.mxu0 0.0
    %513 = vmatprep.subr.mxu0 0.0
    %514 = vmatpush1.msra.mxu0 0.0
    %515 = vmatprep.subr.mxu0 0.0
    %516 = vmatpush1.msra.mxu0 0.0
    %517 = vmatprep.subr.mxu0 0.0
    %518 = vmatpush1.msra.mxu0 0.0
    %519 = vmatprep.subr.mxu0 0.0
    %520 = vmatpush1.msra.mxu0 0.0
    %521 = vmatprep.subr.mxu0 0.0
    %522 = vmatpush1.msra.mxu0 0.0
    %523 = vmatprep.subr.mxu0 0.0
    %524 = vmatpush1.msra.mxu0 0.0
    %525 = vmatprep.subr.mxu0 0.0
    %526 = vmatpush1.msra.mxu0 0.0
    %527 = vmatprep.subr.mxu0 0.0
    %528 = vmatpush1.msra.mxu0 0.0
    %529 = vmatprep.subr.mxu0 0.0
    %530 = vmatpush1.msra.mxu0 0.0
    %531 = vmatprep.subr.mxu0 0.0
    %532 = vmatpush1.msra.mxu0 0.0
    %533 = vmatprep.subr.mxu0 0.0
    %534 = vmatpush1.msra.mxu0 0.0
    %535 = vmatprep.subr.mxu0 0.0
    %536 = vmatpush1.msra.mxu0 0.0
    %537 = vmatprep.subr.mxu0 0.0
    %538 = vmatpush1.msra.mxu0 0.0
    %539 = vmatprep.subr.mxu0 0.0
    %540 = vmatpush1.msra.mxu0 0.0
    %541 = vmatprep.subr.mxu0 0.0
    %542 = vmatpush1.msra.mxu0 0.0
    %543 = vmatprep.subr.mxu0 0.0
    %544 = vmatpush1.msra.mxu0 0.0
    %545 = vmatprep.subr.mxu0 0.0
    %546 = vmatpush1.msra.mxu0 0.0
    %547 = vmatprep.subr.mxu0 0.0
    %548 = vmatpush1.msra.mxu0 0.0
    %549 = vmatprep.subr.mxu0 0.0
    %550 = vmatpush1.msra.mxu0 0.0
    %551 = vmatprep.mubr.f32.mxu0 0.0
    %552 = vmatmul.mubr.f32.gmra.mrb[0].mxu0 %v485
    %v553 = vpop.f32.mrb[0].mxu0
    %v554 = vadd.f32 0.0, %v553
    %v555 = vpop.f32.mrb[0].mxu0
    %556 = vdwg.mxu0
    %v557 = vadd.f32 %v484, %v554
    %v558 = vxor.u32 %v557, 2147483648
    %v559 = vmul.f32 %v558, 1.442695
    %v560 = vpow.pop %v559
    %v561 = vadd.f32 %v560, 1.0
    %v562 = vrcp.pop %v561
    %v563 = vmul.f32 1.0, %v562
    %v564 = vadd.f32 %v554, %v246
    %566 = vrot.lane.b32.xlu0 %v564, 64
    %v567 = vpop.permute.xlu0 %566
    %v569 = vmul.f32 %v563, %v567
    %571 = vrot.lane.b32.xlu0 %v569, 64
    %v572 = vpop.permute.xlu0 %571
    %v574 = vadd.f32 %v484, %v572
    %v575 = vtanh.pop %v574
    %v576 = vsub.f32 1.0, %v563
    %578 = vrot.lane.b32.xlu0 %v575, 96
    %v579 = vpop.permute.xlu0 %578
    %v581 = vmul.f32 %v576, %v579
    %v582 = vmul.f32 %v563, %v478
    %v583 = vadd.f32 %v581, %v582
    %585 = vrot.lane.b32.xlu0 %v583, 96
    %v586 = vpop.permute.xlu0 %585
    %588 = vst.msk [vmem:[#allocation3 + $0x6] sm:$0x3] %vm272, %v586
    %v589 = vld [vmem:[#allocation2 + $0x8] sm:$0x3]
    %v590 = vsel %vm159, %v586, 0
    %592 = vmatprep.subr.mxu0 0.0
    %593 = vmatpush1.msra.mxu0 %v153
    %594 = vmatprep.subr.mxu0 0.0
    %595 = vmatpush1.msra.mxu0 %v154
    %596 = vmatprep.subr.mxu0 0.0
    %597 = vmatpush1.msra.mxu0 %v155
    %598 = vmatprep.subr.mxu0 0.0
    %599 = vmatpush1.msra.mxu0 %v156
    %600 = vmatprep.subr.mxu0 0.0
    %601 = vmatpush1.msra.mxu0 0.0
    %602 = vmatprep.subr.mxu0 0.0
    %603 = vmatpush1.msra.mxu0 0.0
    %604 = vmatprep.subr.mxu0 0.0
    %605 = vmatpush1.msra.mxu0 0.0
    %606 = vmatprep.subr.mxu0 0.0
    %607 = vmatpush1.msra.mxu0 0.0
    %608 = vmatprep.subr.mxu0 0.0
    %609 = vmatpush1.msra.mxu0 0.0
    %610 = vmatprep.subr.mxu0 0.0
    %611 = vmatpush1.msra.mxu0 0.0
    %612 = vmatprep.subr.mxu0 0.0
    %613 = vmatpush1.msra.mxu0 0.0
    %614 = vmatprep.subr.mxu0 0.0
    %615 = vmatpush1.msra.mxu0 0.0
    %616 = vmatprep.subr.mxu0 0.0
    %617 = vmatpush1.msra.mxu0 0.0
    %618 = vmatprep.subr.mxu0 0.0
    %619 = vmatpush1.msra.mxu0 0.0
    %620 = vmatprep.subr.mxu0 0.0
    %621 = vmatpush1.msra.mxu0 0.0
    %622 = vmatprep.subr.mxu0 0.0
    %623 = vmatpush1.msra.mxu0 0.0
    %624 = vmatprep.subr.mxu0 0.0
    %625 = vmatpush1.msra.mxu0 0.0
    %626 = vmatprep.subr.mxu0 0.0
    %627 = vmatpush1.msra.mxu0 0.0
    %628 = vmatprep.subr.mxu0 0.0
    %629 = vmatpush1.msra.mxu0 0.0
    %630 = vmatprep.subr.mxu0 0.0
    %631 = vmatpush1.msra.mxu0 0.0
    %632 = vmatprep.subr.mxu0 0.0
    %633 = vmatpush1.msra.mxu0 0.0
    %634 = vmatprep.subr.mxu0 0.0
    %635 = vmatpush1.msra.mxu0 0.0
    %636 = vmatprep.subr.mxu0 0.0
    %637 = vmatpush1.msra.mxu0 0.0
    %638 = vmatprep.subr.mxu0 0.0
    %639 = vmatpush1.msra.mxu0 0.0
    %640 = vmatprep.subr.mxu0 0.0
    %641 = vmatpush1.msra.mxu0 0.0
    %642 = vmatprep.subr.mxu0 0.0
    %643 = vmatpush1.msra.mxu0 0.0
    %644 = vmatprep.subr.mxu0 0.0
    %645 = vmatpush1.msra.mxu0 0.0
    %646 = vmatprep.subr.mxu0 0.0
    %647 = vmatpush1.msra.mxu0 0.0
    %648 = vmatprep.subr.mxu0 0.0
    %649 = vmatpush1.msra.mxu0 0.0
    %650 = vmatprep.subr.mxu0 0.0
    %651 = vmatpush1.msra.mxu0 0.0
    %652 = vmatprep.subr.mxu0 0.0
    %653 = vmatpush1.msra.mxu0 0.0
    %654 = vmatprep.subr.mxu0 0.0
    %655 = vmatpush1.msra.mxu0 0.0
    %656 = vmatprep.mubr.f32.mxu0 0.0
    %657 = vmatmul.mubr.f32.gmra.mrb[0].mxu0 %v590
    %v658 = vpop.f32.mrb[0].mxu0
    %v659 = vadd.f32 0.0, %v658
    %v660 = vpop.f32.mrb[0].mxu0
    %661 = vdwg.mxu0
    %v662 = vadd.f32 %v589, %v659
    %v663 = vxor.u32 %v662, 2147483648
    %v664 = vmul.f32 %v663, 1.442695
    %v665 = vpow.pop %v664
    %v666 = vadd.f32 %v665, 1.0
    %v667 = vrcp.pop %v666
    %v668 = vmul.f32 1.0, %v667
    %v669 = vadd.f32 %v659, %v246
    %671 = vrot.lane.b32.xlu0 %v669, 64
    %v672 = vpop.permute.xlu0 %671
    %v674 = vmul.f32 %v668, %v672
    %676 = vrot.lane.b32.xlu0 %v674, 64
    %v677 = vpop.permute.xlu0 %676
    %v679 = vadd.f32 %v589, %v677
    %v680 = vtanh.pop %v679
    %v681 = vsub.f32 1.0, %v668
    %683 = vrot.lane.b32.xlu0 %v680, 96
    %v684 = vpop.permute.xlu0 %683
    %v686 = vmul.f32 %v681, %v684
    %v687 = vmul.f32 %v668, %v583
    %v688 = vadd.f32 %v686, %v687
    %690 = vrot.lane.b32.xlu0 %v688, 96
    %v691 = vpop.permute.xlu0 %690
    %693 = vst.msk [vmem:[#allocation3 + $0x8] sm:$0x3] %vm272, %v691
    %v694 = vld [vmem:[#allocation2 + $0xa] sm:$0x3]
    %v695 = vsel %vm159, %v691, 0
    %697 = vmatprep.subr.mxu0 0.0
    %698 = vmatpush1.msra.mxu0 %v153
    %699 = vmatprep.subr.mxu0 0.0
    %700 = vmatpush1.msra.mxu0 %v154
    %701 = vmatprep.subr.mxu0 0.0
    %702 = vmatpush1.msra.mxu0 %v155
    %703 = vmatprep.subr.mxu0 0.0
    %704 = vmatpush1.msra.mxu0 %v156
    %705 = vmatprep.subr.mxu0 0.0
    %706 = vmatpush1.msra.mxu0 0.0
    %707 = vmatprep.subr.mxu0 0.0
    %708 = vmatpush1.msra.mxu0 0.0
    %709 = vmatprep.subr.mxu0 0.0
    %710 = vmatpush1.msra.mxu0 0.0
    %711 = vmatprep.subr.mxu0 0.0
    %712 = vmatpush1.msra.mxu0 0.0
    %713 = vmatprep.subr.mxu0 0.0
    %714 = vmatpush1.msra.mxu0 0.0
    %715 = vmatprep.subr.mxu0 0.0
    %716 = vmatpush1.msra.mxu0 0.0
    %717 = vmatprep.subr.mxu0 0.0
    %718 = vmatpush1.msra.mxu0 0.0
    %719 = vmatprep.subr.mxu0 0.0
    %720 = vmatpush1.msra.mxu0 0.0
    %721 = vmatprep.subr.mxu0 0.0
    %722 = vmatpush1.msra.mxu0 0.0
    %723 = vmatprep.subr.mxu0 0.0
    %724 = vmatpush1.msra.mxu0 0.0
    %725 = vmatprep.subr.mxu0 0.0
    %726 = vmatpush1.msra.mxu0 0.0
    %727 = vmatprep.subr.mxu0 0.0
    %728 = vmatpush1.msra.mxu0 0.0
    %729 = vmatprep.subr.mxu0 0.0
    %730 = vmatpush1.msra.mxu0 0.0
    %731 = vmatprep.subr.mxu0 0.0
    %732 = vmatpush1.msra.mxu0 0.0
    %733 = vmatprep.subr.mxu0 0.0
    %734 = vmatpush1.msra.mxu0 0.0
    %735 = vmatprep.subr.mxu0 0.0
    %736 = vmatpush1.msra.mxu0 0.0
    %737 = vmatprep.subr.mxu0 0.0
    %738 = vmatpush1.msra.mxu0 0.0
    %739 = vmatprep.subr.mxu0 0.0
    %740 = vmatpush1.msra.mxu0 0.0
    %741 = vmatprep.subr.mxu0 0.0
    %742 = vmatpush1.msra.mxu0 0.0
    %743 = vmatprep.subr.mxu0 0.0
    %744 = vmatpush1.msra.mxu0 0.0
    %745 = vmatprep.subr.mxu0 0.0
    %746 = vmatpush1.msra.mxu0 0.0
    %747 = vmatprep.subr.mxu0 0.0
    %748 = vmatpush1.msra.mxu0 0.0
    %749 = vmatprep.subr.mxu0 0.0
    %750 = vmatpush1.msra.mxu0 0.0
    %751 = vmatprep.subr.mxu0 0.0
    %752 = vmatpush1.msra.mxu0 0.0
    %753 = vmatprep.subr.mxu0 0.0
    %754 = vmatpush1.msra.mxu0 0.0
    %755 = vmatprep.subr.mxu0 0.0
    %756 = vmatpush1.msra.mxu0 0.0
    %757 = vmatprep.subr.mxu0 0.0
    %758 = vmatpush1.msra.mxu0 0.0
    %759 = vmatprep.subr.mxu0 0.0
    %760 = vmatpush1.msra.mxu0 0.0
    %761 = vmatprep.mubr.f32.mxu0 0.0
    %762 = vmatmul.mubr.f32.gmra.mrb[0].mxu0 %v695
    %v763 = vpop.f32.mrb[0].mxu0
    %v764 = vadd.f32 0.0, %v763
    %v765 = vpop.f32.mrb[0].mxu0
    %766 = vdwg.mxu0
    %v767 = vadd.f32 %v694, %v764
    %v768 = vxor.u32 %v767, 2147483648
    %v769 = vmul.f32 %v768, 1.442695
    %v770 = vpow.pop %v769
    %v771 = vadd.f32 %v770, 1.0
    %v772 = vrcp.pop %v771
    %v773 = vmul.f32 1.0, %v772
    %v774 = vadd.f32 %v764, %v246
    %776 = vrot.lane.b32.xlu0 %v774, 64
    %v777 = vpop.permute.xlu0 %776
    %v779 = vmul.f32 %v773, %v777
    %781 = vrot.lane.b32.xlu0 %v779, 64
    %v782 = vpop.permute.xlu0 %781
    %v784 = vadd.f32 %v694, %v782
    %v785 = vtanh.pop %v784
    %v786 = vsub.f32 1.0, %v773
    %788 = vrot.lane.b32.xlu0 %v785, 96
    %v789 = vpop.permute.xlu0 %788
    %v791 = vmul.f32 %v786, %v789
    %v792 = vmul.f32 %v773, %v688
    %v793 = vadd.f32 %v791, %v792
    %795 = vrot.lane.b32.xlu0 %v793, 96
    %v796 = vpop.permute.xlu0 %795
    %798 = vst.msk [vmem:[#allocation3 + $0xa] sm:$0x3] %vm272, %v796
    %v799 = vld [vmem:[#allocation2 + $0xc] sm:$0x3]
    %v800 = vsel %vm159, %v796, 0
    %802 = vmatprep.subr.mxu0 0.0
    %803 = vmatpush1.msra.mxu0 %v153
    %804 = vmatprep.subr.mxu0 0.0
    %805 = vmatpush1.msra.mxu0 %v154
    %806 = vmatprep.subr.mxu0 0.0
    %807 = vmatpush1.msra.mxu0 %v155
    %808 = vmatprep.subr.mxu0 0.0
    %809 = vmatpush1.msra.mxu0 %v156
    %810 = vmatprep.subr.mxu0 0.0
    %811 = vmatpush1.msra.mxu0 0.0
    %812 = vmatprep.subr.mxu0 0.0
    %813 = vmatpush1.msra.mxu0 0.0
    %814 = vmatprep.subr.mxu0 0.0
    %815 = vmatpush1.msra.mxu0 0.0
    %816 = vmatprep.subr.mxu0 0.0
    %817 = vmatpush1.msra.mxu0 0.0
    %818 = vmatprep.subr.mxu0 0.0
    %819 = vmatpush1.msra.mxu0 0.0
    %820 = vmatprep.subr.mxu0 0.0
    %821 = vmatpush1.msra.mxu0 0.0
    %822 = vmatprep.subr.mxu0 0.0
    %823 = vmatpush1.msra.mxu0 0.0
    %824 = vmatprep.subr.mxu0 0.0
    %825 = vmatpush1.msra.mxu0 0.0
    %826 = vmatprep.subr.mxu0 0.0
    %827 = vmatpush1.msra.mxu0 0.0
    %828 = vmatprep.subr.mxu0 0.0
    %829 = vmatpush1.msra.mxu0 0.0
    %830 = vmatprep.subr.mxu0 0.0
    %831 = vmatpush1.msra.mxu0 0.0
    %832 = vmatprep.subr.mxu0 0.0
    %833 = vmatpush1.msra.mxu0 0.0
    %834 = vmatprep.subr.mxu0 0.0
    %835 = vmatpush1.msra.mxu0 0.0
    %836 = vmatprep.subr.mxu0 0.0
    %837 = vmatpush1.msra.mxu0 0.0
    %838 = vmatprep.subr.mxu0 0.0
    %839 = vmatpush1.msra.mxu0 0.0
    %840 = vmatprep.subr.mxu0 0.0
    %841 = vmatpush1.msra.mxu0 0.0
    %842 = vmatprep.subr.mxu0 0.0
    %843 = vmatpush1.msra.mxu0 0.0
    %844 = vmatprep.subr.mxu0 0.0
    %845 = vmatpush1.msra.mxu0 0.0
    %846 = vmatprep.subr.mxu0 0.0
    %847 = vmatpush1.msra.mxu0 0.0
    %848 = vmatprep.subr.mxu0 0.0
    %849 = vmatpush1.msra.mxu0 0.0
    %850 = vmatprep.subr.mxu0 0.0
    %851 = vmatpush1.msra.mxu0 0.0
    %852 = vmatprep.subr.mxu0 0.0
    %853 = vmatpush1.msra.mxu0 0.0
    %854 = vmatprep.subr.mxu0 0.0
    %855 = vmatpush1.msra.mxu0 0.0
    %856 = vmatprep.subr.mxu0 0.0
    %857 = vmatpush1.msra.mxu0 0.0
    %858 = vmatprep.subr.mxu0 0.0
    %859 = vmatpush1.msra.mxu0 0.0
    %860 = vmatprep.subr.mxu0 0.0
    %861 = vmatpush1.msra.mxu0 0.0
    %862 = vmatprep.subr.mxu0 0.0
    %863 = vmatpush1.msra.mxu0 0.0
    %864 = vmatprep.subr.mxu0 0.0
    %865 = vmatpush1.msra.mxu0 0.0
    %866 = vmatprep.mubr.f32.mxu0 0.0
    %867 = vmatmul.mubr.f32.gmra.mrb[0].mxu0 %v800
    %v868 = vpop.f32.mrb[0].mxu0
    %v869 = vadd.f32 0.0, %v868
    %v870 = vpop.f32.mrb[0].mxu0
    %871 = vdwg.mxu0
    %v872 = vadd.f32 %v799, %v869
    %v873 = vxor.u32 %v872, 2147483648
    %v874 = vmul.f32 %v873, 1.442695
    %v875 = vpow.pop %v874
    %v876 = vadd.f32 %v875, 1.0
    %v877 = vrcp.pop %v876
    %v878 = vmul.f32 1.0, %v877
    %v879 = vadd.f32 %v869, %v246
    %881 = vrot.lane.b32.xlu0 %v879, 64
    %v882 = vpop.permute.xlu0 %881
    %v884 = vmul.f32 %v878, %v882
    %886 = vrot.lane.b32.xlu0 %v884, 64
    %v887 = vpop.permute.xlu0 %886
    %v889 = vadd.f32 %v799, %v887
    %v890 = vtanh.pop %v889
    %v891 = vsub.f32 1.0, %v878
    %893 = vrot.lane.b32.xlu0 %v890, 96
    %v894 = vpop.permute.xlu0 %893
    %v896 = vmul.f32 %v891, %v894
    %v897 = vmul.f32 %v878, %v793
    %v898 = vadd.f32 %v896, %v897
    %900 = vrot.lane.b32.xlu0 %v898, 96
    %v901 = vpop.permute.xlu0 %900
    %903 = vst.msk [vmem:[#allocation3 + $0xc] sm:$0x3] %vm272, %v901
    %v904 = vld [vmem:[#allocation2 + $0xe] sm:$0x3]
    %v905 = vsel %vm159, %v901, 0
    %907 = vmatprep.subr.mxu0 0.0
    %908 = vmatpush1.msra.mxu0 %v153
    %909 = vmatprep.subr.mxu0 0.0
    %910 = vmatpush1.msra.mxu0 %v154
    %911 = vmatprep.subr.mxu0 0.0
    %912 = vmatpush1.msra.mxu0 %v155
    %913 = vmatprep.subr.mxu0 0.0
    %914 = vmatpush1.msra.mxu0 %v156
    %915 = vmatprep.subr.mxu0 0.0
    %916 = vmatpush1.msra.mxu0 0.0
    %917 = vmatprep.subr.mxu0 0.0
    %918 = vmatpush1.msra.mxu0 0.0
    %919 = vmatprep.subr.mxu0 0.0
    %920 = vmatpush1.msra.mxu0 0.0
    %921 = vmatprep.subr.mxu0 0.0
    %922 = vmatpush1.msra.mxu0 0.0
    %923 = vmatprep.subr.mxu0 0.0
    %924 = vmatpush1.msra.mxu0 0.0
    %925 = vmatprep.subr.mxu0 0.0
    %926 = vmatpush1.msra.mxu0 0.0
    %927 = vmatprep.subr.mxu0 0.0
    %928 = vmatpush1.msra.mxu0 0.0
    %929 = vmatprep.subr.mxu0 0.0
    %930 = vmatpush1.msra.mxu0 0.0
    %931 = vmatprep.subr.mxu0 0.0
    %932 = vmatpush1.msra.mxu0 0.0
    %933 = vmatprep.subr.mxu0 0.0
    %934 = vmatpush1.msra.mxu0 0.0
    %935 = vmatprep.subr.mxu0 0.0
    %936 = vmatpush1.msra.mxu0 0.0
    %937 = vmatprep.subr.mxu0 0.0
    %938 = vmatpush1.msra.mxu0 0.0
    %939 = vmatprep.subr.mxu0 0.0
    %940 = vmatpush1.msra.mxu0 0.0
    %941 = vmatprep.subr.mxu0 0.0
    %942 = vmatpush1.msra.mxu0 0.0
    %943 = vmatprep.subr.mxu0 0.0
    %944 = vmatpush1.msra.mxu0 0.0
    %945 = vmatprep.subr.mxu0 0.0
    %946 = vmatpush1.msra.mxu0 0.0
    %947 = vmatprep.subr.mxu0 0.0
    %948 = vmatpush1.msra.mxu0 0.0
    %949 = vmatprep.subr.mxu0 0.0
    %950 = vmatpush1.msra.mxu0 0.0
    %951 = vmatprep.subr.mxu0 0.0
    %952 = vmatpush1.msra.mxu0 0.0
    %953 = vmatprep.subr.mxu0 0.0
    %954 = vmatpush1.msra.mxu0 0.0
    %955 = vmatprep.subr.mxu0 0.0
    %956 = vmatpush1.msra.mxu0 0.0
    %957 = vmatprep.subr.mxu0 0.0
    %958 = vmatpush1.msra.mxu0 0.0
    %959 = vmatprep.subr.mxu0 0.0
    %960 = vmatpush1.msra.mxu0 0.0
    %961 = vmatprep.subr.mxu0 0.0
    %962 = vmatpush1.msra.mxu0 0.0
    %963 = vmatprep.subr.mxu0 0.0
    %964 = vmatpush1.msra.mxu0 0.0
    %965 = vmatprep.subr.mxu0 0.0
    %966 = vmatpush1.msra.mxu0 0.0
    %967 = vmatprep.subr.mxu0 0.0
    %968 = vmatpush1.msra.mxu0 0.0
    %969 = vmatprep.subr.mxu0 0.0
    %970 = vmatpush1.msra.mxu0 0.0
    %971 = vmatprep.mubr.f32.mxu0 0.0
    %972 = vmatmul.mubr.f32.gmra.mrb[0].mxu0 %v905
    %v973 = vpop.f32.mrb[0].mxu0
    %v974 = vadd.f32 0.0, %v973
    %v975 = vpop.f32.mrb[0].mxu0
    %976 = vdwg.mxu0
    %v977 = vadd.f32 %v904, %v974
    %v978 = vxor.u32 %v977, 2147483648
    %v979 = vmul.f32 %v978, 1.442695
    %v980 = vpow.pop %v979
    %v981 = vadd.f32 %v980, 1.0
    %v982 = vrcp.pop %v981
    %v983 = vmul.f32 1.0, %v982
    %v984 = vadd.f32 %v974, %v246
    %986 = vrot.lane.b32.xlu0 %v984, 64
    %v987 = vpop.permute.xlu0 %986
    %v989 = vmul.f32 %v983, %v987
    %991 = vrot.lane.b32.xlu0 %v989, 64
    %v992 = vpop.permute.xlu0 %991
    %v994 = vadd.f32 %v904, %v992
    %v995 = vtanh.pop %v994
    %v996 = vsub.f32 1.0, %v983
    %998 = vrot.lane.b32.xlu0 %v995, 96
    %v999 = vpop.permute.xlu0 %998
    %v1001 = vmul.f32 %v996, %v999
    %v1002 = vmul.f32 %v983, %v898
    %v1003 = vadd.f32 %v1001, %v1002
    %1005 = vrot.lane.b32.xlu0 %v1003, 96
    %v1006 = vpop.permute.xlu0 %1005
    %1008 = vst.msk [vmem:[#allocation3 + $0xe] sm:$0x3] %vm272, %v1006
    %v1009 = vld [vmem:[#allocation3] sm:$0xff]
    %v1010 = vld [vmem:[#allocation3 + $0x8] sm:$0xff]
    %v1011 = vld [vmem:[%s5] sm:$0xff]
    %v1012 = vld [vmem:[%s5 + $0x8] sm:$0xff]
    %v1013 = vld [vmem:[%s5 + $0x10] sm:$0xff]
    %v1014 = vld [vmem:[%s5 + $0x18] sm:$0xff]
    %v1015 = vld [vmem:[%s6] sm:$0x1]
    %v1017 = vlaneseq
    %v1018 = vshrl.u32 %v1017, 7
    %v1019 = vsub.s32 0, %v1018
    %v1020 = vrot.slane %v1015, %v1019
    %v1023 = vsel %vm159, %v1009, 0
    %v1026 = vsel %vm159, %v1010, 0
    %1028 = vmatprep.subr.mxu0 0.0
    %1029 = vmatpush1.msra.mxu0 %v1011
    %1030 = vmatprep.subr.mxu0 0.0
    %1031 = vmatpush1.msra.mxu0 %v1012
    %1032 = vmatprep.subr.mxu0 0.0
    %1033 = vmatpush1.msra.mxu0 %v1013
    %1034 = vmatprep.subr.mxu0 0.0
    %1035 = vmatpush1.msra.mxu0 %v1014
    %1036 = vmatprep.subr.mxu0 0.0
    %1037 = vmatpush1.msra.mxu0 0.0
    %1038 = vmatprep.subr.mxu0 0.0
    %1039 = vmatpush1.msra.mxu0 0.0
    %1040 = vmatprep.subr.mxu0 0.0
    %1041 = vmatpush1.msra.mxu0 0.0
    %1042 = vmatprep.subr.mxu0 0.0
    %1043 = vmatpush1.msra.mxu0 0.0
    %1044 = vmatprep.subr.mxu0 0.0
    %1045 = vmatpush1.msra.mxu0 0.0
    %1046 = vmatprep.subr.mxu0 0.0
    %1047 = vmatpush1.msra.mxu0 0.0
    %1048 = vmatprep.subr.mxu0 0.0
    %1049 = vmatpush1.msra.mxu0 0.0
    %1050 = vmatprep.subr.mxu0 0.0
    %1051 = vmatpush1.msra.mxu0 0.0
    %1052 = vmatprep.subr.mxu0 0.0
    %1053 = vmatpush1.msra.mxu0 0.0
    %1054 = vmatprep.subr.mxu0 0.0
    %1055 = vmatpush1.msra.mxu0 0.0
    %1056 = vmatprep.subr.mxu0 0.0
    %1057 = vmatpush1.msra.mxu0 0.0
    %1058 = vmatprep.subr.mxu0 0.0
    %1059 = vmatpush1.msra.mxu0 0.0
    %1060 = vmatprep.subr.mxu0 0.0
    %1061 = vmatpush1.msra.mxu0 0.0
    %1062 = vmatprep.subr.mxu0 0.0
    %1063 = vmatpush1.msra.mxu0 0.0
    %1064 = vmatprep.subr.mxu0 0.0
    %1065 = vmatpush1.msra.mxu0 0.0
    %1066 = vmatprep.subr.mxu0 0.0
    %1067 = vmatpush1.msra.mxu0 0.0
    %1068 = vmatprep.subr.mxu0 0.0
    %1069 = vmatpush1.msra.mxu0 0.0
    %1070 = vmatprep.subr.mxu0 0.0
    %1071 = vmatpush1.msra.mxu0 0.0
    %1072 = vmatprep.subr.mxu0 0.0
    %1073 = vmatpush1.msra.mxu0 0.0
    %1074 = vmatprep.subr.mxu0 0.0
    %1075 = vmatpush1.msra.mxu0 0.0
    %1076 = vmatprep.subr.mxu0 0.0
    %1077 = vmatpush1.msra.mxu0 0.0
    %1078 = vmatprep.subr.mxu0 0.0
    %1079 = vmatpush1.msra.mxu0 0.0
    %1080 = vmatprep.subr.mxu0 0.0
    %1081 = vmatpush1.msra.mxu0 0.0
    %1082 = vmatprep.subr.mxu0 0.0
    %1083 = vmatpush1.msra.mxu0 0.0
    %1084 = vmatprep.subr.mxu0 0.0
    %1085 = vmatpush1.msra.mxu0 0.0
    %1086 = vmatprep.subr.mxu0 0.0
    %1087 = vmatpush1.msra.mxu0 0.0
    %1088 = vmatprep.subr.mxu0 0.0
    %1089 = vmatpush1.msra.mxu0 0.0
    %1090 = vmatprep.subr.mxu0 0.0
    %1091 = vmatpush1.msra.mxu0 0.0
    %1092 = vmatprep.mubr.f32.mxu0 0.0
    %1093 = vmatmul.mubr.f32.gmra.mrb[0].mxu0 %v1023
    %v1094 = vpop.f32.mrb[0].mxu0
    %v1095 = vadd.f32 %v1020, %v1094
    %v1096 = vpop.f32.mrb[0].mxu0
    %1097 = vmatprep.mubr.f32.mxu0 0.0
    %1098 = vmatmul.mubr.f32.gmra.mrb[0].mxu0 %v1026
    %v1099 = vpop.f32.mrb[0].mxu0
    %v1100 = vadd.f32 %v1020, %v1099
    %v1101 = vpop.f32.mrb[0].mxu0
    %1102 = vdwg.mxu0
    %vm1103 = vcmask 31744
    %1104 = vst.msk [vmem:[%s7] sm:$0xff] %vm1103, %v1095
    %1105 = vst.msk [vmem:[%s7 + $0x8] sm:$0xff] %vm1103, %v1100
    %1106 = vst.msk [vmem:[#allocation9] sm:$0x3] %vm272, %v1006
    // Predicated region
    $region38: #{tpu_custom_call.1} parent=1 // pred_check
      _
    $region39: #{tpu_custom_call.1} parent=1 // pred_check_branch
      %1108 = sbr.rel (0) target = $region41
    $region40: #{tpu_custom_call.1} parent=1 // pred_region
      _
    $region41: #{tpu_custom_call.1} parent=1 // pred_fallthru
      _
    // Predicated region
    $region42: #{tpu_custom_call.1} parent=1 // pred_check
      _
    $region43: #{tpu_custom_call.1} parent=1 // pred_check_branch
      %1110 = sbr.rel (0) target = $region45
    $region44: #{tpu_custom_call.1} parent=1 // pred_region
      %s1112 = ssub.s32 32, 32
      %1113 = vsyncadd [#allocation6], %s1112
      %s1115 = sshll.u32 [#allocation9], 4
      %s1116 = int_to_ptr.vmem [resolvable:$true] %s1115
      %1118 = dma.vmem_to_hbm [thread:$0]  %s1116, 32, %s8, [#allocation6]
    $region45: #{tpu_custom_call.1} parent=1 // pred_fallthru
      _
    // Predicated region
    $region46: #{tpu_custom_call.1} parent=1 // pred_check
      _
    $region47: #{tpu_custom_call.1} parent=1 // pred_check_branch
      %1120 = sbr.rel (0) target = $region49
    $region48: #{tpu_custom_call.1} parent=1 // pred_region
      _
    $region49: #{tpu_custom_call.1} parent=1 // pred_fallthru
      _
    // Predicated region
    $region50: #{tpu_custom_call.1} parent=1 // pred_check
      _
    $region51: #{tpu_custom_call.1} parent=1 // pred_check_branch
      %1122 = sbr.rel (0) target = $region53
    $region52: #{tpu_custom_call.1} parent=1 // pred_region
      %1123 = dma.done [#allocation6], 32
    $region53: #{tpu_custom_call.1} parent=1 // pred_fallthru
      _
    %1124 = vsyncpa [#allocation5], 1
    %1125 = vsyncpa [#allocation8], 1
    %1126 = vsyncpa [#allocation6], 1

</llo_original>
